<compile_context>
chip_gen: v5e
topology: v5e:2x2
jax: 0.10.0
libtpu: 0.0.40
codegen_flags: <defaults>
</compile_context>

<pallas_src>
import functools

import jax
import jax.numpy as jnp
from jax.experimental import pallas as pl
from jax.experimental.pallas import tpu as pltpu


def _make_border_masks(h, w):
    """(9, 1, H*W) f32 masks: 1 where 3x3 tap (dy, dx) stays inside the image."""
    ys = jnp.arange(h).reshape(h, 1)
    xs = jnp.arange(w).reshape(1, w)
    masks = []
    for t in range(9):
        dy, dx = t // 3 - 1, t % 3 - 1
        m = ((ys + dy >= 0) & (ys + dy < h) & (xs + dx >= 0) & (xs + dx < w))
        masks.append(m.astype(jnp.float32).reshape(1, h * w))
    return jnp.stack(masks, axis=0)


def _kpd_conv_head_kernel(x_ref, w1_ref, b1_ref, w2_ref, b2_ref, m_ref, o_ref,
                          *, height, width):
    """Fused 3x3 conv + ReLU + 1x1 conv (already narrowed), channel-major.

    x_ref : (1, Cin, H*W)     raw NCHW image, spatial dims flattened
    w1_ref: (9, hid, Cin)     per-tap 3x3 conv weights
    b1_ref: (hid, 1)
    w2_ref: (narrow, hid)     1x1 conv weights, pre-sliced to 50 channels
    b2_ref: (narrow, 1)
    m_ref : (9, 1, H*W)       border masks ("same" zero padding of the 3x3 conv)
    o_ref : (1, narrow, H*W)  NCHW heatmaps (spatial dims flattened)
    """
    x = x_ref[0]                                     # (Cin, HW)
    hw = height * width
    hid = w1_ref.shape[1]

    acc = jnp.zeros((hid, hw), jnp.float32)
    for t in range(9):                               # unrolled at trace time
        dy, dx = t // 3 - 1, t % 3 - 1
        off = dy * width + dx                        # flat source offset
        if off == 0:
            shifted = x
        else:
            # dest pixel p reads source pixel p + off; wrap-around positions are
            # always border-invalid and get zeroed by the mask below.
            shifted = pltpu.roll(x, (-off) % hw, axis=1)
        tap = shifted * m_ref[t]                     # zero-pad at image borders
        acc = acc + jnp.dot(w1_ref[t], tap, preferred_element_type=jnp.float32)

    hidden = jnp.maximum(acc + b1_ref[...], 0.0)     # (hid, HW), ReLU
    out = jnp.dot(w2_ref[...], hidden, preferred_element_type=jnp.float32)
    o_ref[0] = (out + b2_ref[...]).astype(o_ref.dtype)


def inferennet_fast_forward(x_nchw, params, *, narrow_ch=50):
    """Pallas implementation of InferenNet_fast.forward.

    x_nchw: (N, Cin, H, W) float32  ->  (N, narrow_ch, H, W) float32
    """
    w1, b1, w2, b2 = params["w1"], params["b1"], params["w2"], params["b2"]
    n, cin, h, w = x_nchw.shape
    hw = h * w                       # 256 here: lane-dense (multiple of 128)
    hid = w1.shape[1]
    assert w1.shape[0] == cin * 9

    # Channel-major operand prep (tiny, weight-side; fuses narrow(1, 0, 50)).
    w1_taps = jnp.transpose(w1.reshape(cin, 9, hid), (1, 2, 0))   # (9, hid, Cin)
    b1_col = b1.reshape(hid, 1)                                   # (hid, 1)
    w2t = jnp.transpose(w2[:, :narrow_ch], (1, 0))                # (narrow, hid)
    b2_col = b2[:, :narrow_ch].reshape(narrow_ch, 1)              # (narrow, 1)

    x3 = x_nchw.reshape(n, cin, hw)          # free reshape; stays NCHW in HBM
    masks = _make_border_masks(h, w)         # (9, 1, HW)

    kernel = functools.partial(_kpd_conv_head_kernel, height=h, width=w)

    out3 = pl.pallas_call(
        kernel,
        out_shape=jax.ShapeDtypeStruct((n, narrow_ch, hw), jnp.float32),
        grid_spec=pltpu.PrefetchScalarGridSpec(
            num_scalar_prefetch=0,
            grid=(n,),   # one image per step; batch axis sharded across cores
            in_specs=[
                pl.BlockSpec((1, cin, hw), lambda i: (i, 0, 0)),
                pl.BlockSpec((9, hid, cin), lambda i: (0, 0, 0)),
                pl.BlockSpec((hid, 1), lambda i: (0, 0)),
                pl.BlockSpec((narrow_ch, hid), lambda i: (0, 0)),
                pl.BlockSpec((narrow_ch, 1), lambda i: (0, 0)),
                pl.BlockSpec((9, 1, hw), lambda i: (0, 0, 0)),
            ],
            out_specs=pl.BlockSpec((1, narrow_ch, hw), lambda i: (i, 0, 0)),
        ),
        compiler_params=pltpu.CompilerParams(
            dimension_semantics=("parallel",)),
    )(x3, w1_taps, b1_col, w2t, b2_col, masks)

    return out3.reshape(n, narrow_ch, h, w)   # already channel-major => NCHW


def make_params(key, cin=4, hidden=32, cout=64):
    k1, k2, k3, k4 = jax.random.split(key, 4)
    w1 = 0.05 * jax.random.normal(k1, (cin * 9, hidden), jnp.float32)
    b1 = 0.01 * jax.random.normal(k2, (1, hidden), jnp.float32)
    w2 = 0.05 * jax.random.normal(k3, (hidden, cout), jnp.float32)
    b2 = 0.01 * jax.random.normal(k4, (1, cout), jnp.float32)
    return {"w1": w1, "b1": b1, "w2": w2, "b2": b2}


def _im2col_3x3(x_nchw):
    """Reference-only im2col (correctness check only; NOT on the kernel path)."""
    n, c, h, w = x_nchw.shape
    xp = jnp.pad(x_nchw, ((0, 0), (0, 0), (1, 1), (1, 1)))
    cols = [xp[:, :, dy:dy + h, dx:dx + w] for dy in range(3) for dx in range(3)]
    patches = jnp.stack(cols, axis=2)                       # (N, C, 9, H, W)
    patches = jnp.transpose(patches, (0, 3, 4, 1, 2)).reshape(n, h, w, c * 9)
    return patches.reshape(n * h * w, c * 9)


if __name__ == "__main__":
    key = jax.random.PRNGKey(0)
    kx, kp = jax.random.split(key)

    N, CIN, H, W = 2, 4, 16, 16
    x = jax.random.normal(kx, (N, CIN, H, W), jnp.float32)   # NCHW, like PyTorch
    params = make_params(kp, cin=CIN, hidden=32, cout=64)

    out = jax.block_until_ready(inferennet_fast_forward(x, params))
    assert out.shape == (N, 50, H, W), out.shape

    # Correctness check against a pure-JAX reference of the same synthetic head.
    hp = jax.lax.Precision.HIGHEST
    patches = _im2col_3x3(x)
    hid_ref = jnp.maximum(
        jnp.dot(patches, params["w1"], precision=hp) + params["b1"], 0.0)
    ref = jnp.dot(hid_ref, params["w2"], precision=hp) + params["b2"]
    ref = jnp.transpose(ref.reshape(N, H, W, 64), (0, 3, 1, 2))[:, :50]
    assert jnp.allclose(out, ref, atol=1e-4, rtol=1e-4), \
        float(jnp.max(jnp.abs(out - ref)))

    print("KERNEL_OK")
</pallas_src>

<mosaic_0001>
module attributes {stable_mosaic.version = 11 : i64} {
  func.func @_kpd_conv_head_kernel(%arg0: i32, %arg1: memref<1x4x256xf32, #tpu.memory_space<vmem>>, %arg2: memref<9x32x4xf32, #tpu.memory_space<vmem>>, %arg3: memref<32x1xf32, #tpu.memory_space<vmem>>, %arg4: memref<50x32xf32, #tpu.memory_space<vmem>>, %arg5: memref<50x1xf32, #tpu.memory_space<vmem>>, %arg6: memref<9x1x256xf32, #tpu.memory_space<vmem>>, %arg7: memref<1x50x256xf32, #tpu.memory_space<vmem>>) attributes {dimension_semantics = [#tpu.dimension_semantics<parallel>], iteration_bounds = array<i64: 2>, scalar_prefetch = 0 : i64, scratch_operands = 0 : i64, tpu.core_type = #tpu.core_type<tc>, window_params = [{transform_indices = @transform_0, window_bounds = array<i64: 1, 4, 256>}, {pipeline_mode = #tpu.pipeline_mode<synchronous>, transform_indices = @transform_1, window_bounds = array<i64: 9, 32, 4>}, {pipeline_mode = #tpu.pipeline_mode<synchronous>, transform_indices = @transform_2, window_bounds = array<i64: 32, 1>}, {pipeline_mode = #tpu.pipeline_mode<synchronous>, transform_indices = @transform_3, window_bounds = array<i64: 50, 32>}, {pipeline_mode = #tpu.pipeline_mode<synchronous>, transform_indices = @transform_4, window_bounds = array<i64: 50, 1>}, {pipeline_mode = #tpu.pipeline_mode<synchronous>, transform_indices = @transform_5, window_bounds = array<i64: 9, 1, 256>}, {transform_indices = @transform_6, window_bounds = array<i64: 1, 50, 256>}]} {
    %c0 = arith.constant 0 : index
    %c0_0 = arith.constant 0 : index
    %c0_1 = arith.constant 0 : index
    %0 = vector.load %arg1[%c0, %c0_0, %c0_1] : memref<1x4x256xf32, #tpu.memory_space<vmem>>, vector<1x4x256xf32>
    %1 = vector.shape_cast %0 : vector<1x4x256xf32> to vector<4x256xf32>
    %cst = arith.constant 0.000000e+00 : f32
    %2 = vector.broadcast %cst : f32 to vector<32x256xf32>
    %c17_i32 = arith.constant 17 : i32
    %3 = tpu.dynamic_rotate %1 by %c17_i32 dim 1 : vector<4x256xf32>, i32 -> vector<4x256xf32>
    %c0_2 = arith.constant 0 : index
    %c0_3 = arith.constant 0 : index
    %c0_4 = arith.constant 0 : index
    %4 = vector.load %arg6[%c0_2, %c0_3, %c0_4] : memref<9x1x256xf32, #tpu.memory_space<vmem>>, vector<1x1x256xf32>
    %5 = vector.shape_cast %4 : vector<1x1x256xf32> to vector<1x256xf32>
    %6 = vector.broadcast %5 : vector<1x256xf32> to vector<4x256xf32>
    %7 = arith.mulf %3, %6 : vector<4x256xf32>
    %c0_5 = arith.constant 0 : index
    %c0_6 = arith.constant 0 : index
    %c0_7 = arith.constant 0 : index
    %8 = vector.load %arg2[%c0_5, %c0_6, %c0_7] : memref<9x32x4xf32, #tpu.memory_space<vmem>>, vector<1x32x4xf32>
    %9 = vector.shape_cast %8 : vector<1x32x4xf32> to vector<32x4xf32>
    %cst_8 = arith.constant dense<0.000000e+00> : vector<32x256xf32>
    %10 = tpu.matmul %9, %7, %cst_8 {dimension_numbers = #tpu.dot_dimension_numbers<[1], [0], [0], [1], [0, 0, 1, 1], [], []>} : vector<32x4xf32>, vector<4x256xf32>, vector<32x256xf32> -> vector<32x256xf32>
    %11 = arith.addf %2, %10 : vector<32x256xf32>
    %c16_i32 = arith.constant 16 : i32
    %12 = tpu.dynamic_rotate %1 by %c16_i32 dim 1 : vector<4x256xf32>, i32 -> vector<4x256xf32>
    %c1 = arith.constant 1 : index
    %c0_9 = arith.constant 0 : index
    %c0_10 = arith.constant 0 : index
    %13 = vector.load %arg6[%c1, %c0_9, %c0_10] : memref<9x1x256xf32, #tpu.memory_space<vmem>>, vector<1x1x256xf32>
    %14 = vector.shape_cast %13 : vector<1x1x256xf32> to vector<1x256xf32>
    %15 = vector.broadcast %14 : vector<1x256xf32> to vector<4x256xf32>
    %16 = arith.mulf %12, %15 : vector<4x256xf32>
    %c1_11 = arith.constant 1 : index
    %c0_12 = arith.constant 0 : index
    %c0_13 = arith.constant 0 : index
    %17 = vector.load %arg2[%c1_11, %c0_12, %c0_13] : memref<9x32x4xf32, #tpu.memory_space<vmem>>, vector<1x32x4xf32>
    %18 = vector.shape_cast %17 : vector<1x32x4xf32> to vector<32x4xf32>
    %cst_14 = arith.constant dense<0.000000e+00> : vector<32x256xf32>
    %19 = tpu.matmul %18, %16, %cst_14 {dimension_numbers = #tpu.dot_dimension_numbers<[1], [0], [0], [1], [0, 0, 1, 1], [], []>} : vector<32x4xf32>, vector<4x256xf32>, vector<32x256xf32> -> vector<32x256xf32>
    %20 = arith.addf %11, %19 : vector<32x256xf32>
    %c15_i32 = arith.constant 15 : i32
    %21 = tpu.dynamic_rotate %1 by %c15_i32 dim 1 : vector<4x256xf32>, i32 -> vector<4x256xf32>
    %c2 = arith.constant 2 : index
    %c0_15 = arith.constant 0 : index
    %c0_16 = arith.constant 0 : index
    %22 = vector.load %arg6[%c2, %c0_15, %c0_16] : memref<9x1x256xf32, #tpu.memory_space<vmem>>, vector<1x1x256xf32>
    %23 = vector.shape_cast %22 : vector<1x1x256xf32> to vector<1x256xf32>
    %24 = vector.broadcast %23 : vector<1x256xf32> to vector<4x256xf32>
    %25 = arith.mulf %21, %24 : vector<4x256xf32>
    %c2_17 = arith.constant 2 : index
    %c0_18 = arith.constant 0 : index
    %c0_19 = arith.constant 0 : index
    %26 = vector.load %arg2[%c2_17, %c0_18, %c0_19] : memref<9x32x4xf32, #tpu.memory_space<vmem>>, vector<1x32x4xf32>
    %27 = vector.shape_cast %26 : vector<1x32x4xf32> to vector<32x4xf32>
    %cst_20 = arith.constant dense<0.000000e+00> : vector<32x256xf32>
    %28 = tpu.matmul %27, %25, %cst_20 {dimension_numbers = #tpu.dot_dimension_numbers<[1], [0], [0], [1], [0, 0, 1, 1], [], []>} : vector<32x4xf32>, vector<4x256xf32>, vector<32x256xf32> -> vector<32x256xf32>
    %29 = arith.addf %20, %28 : vector<32x256xf32>
    %c1_i32 = arith.constant 1 : i32
    %30 = tpu.dynamic_rotate %1 by %c1_i32 dim 1 : vector<4x256xf32>, i32 -> vector<4x256xf32>
    %c3 = arith.constant 3 : index
    %c0_21 = arith.constant 0 : index
    %c0_22 = arith.constant 0 : index
    %31 = vector.load %arg6[%c3, %c0_21, %c0_22] : memref<9x1x256xf32, #tpu.memory_space<vmem>>, vector<1x1x256xf32>
    %32 = vector.shape_cast %31 : vector<1x1x256xf32> to vector<1x256xf32>
    %33 = vector.broadcast %32 : vector<1x256xf32> to vector<4x256xf32>
    %34 = arith.mulf %30, %33 : vector<4x256xf32>
    %c3_23 = arith.constant 3 : index
    %c0_24 = arith.constant 0 : index
    %c0_25 = arith.constant 0 : index
    %35 = vector.load %arg2[%c3_23, %c0_24, %c0_25] : memref<9x32x4xf32, #tpu.memory_space<vmem>>, vector<1x32x4xf32>
    %36 = vector.shape_cast %35 : vector<1x32x4xf32> to vector<32x4xf32>
    %cst_26 = arith.constant dense<0.000000e+00> : vector<32x256xf32>
    %37 = tpu.matmul %36, %34, %cst_26 {dimension_numbers = #tpu.dot_dimension_numbers<[1], [0], [0], [1], [0, 0, 1, 1], [], []>} : vector<32x4xf32>, vector<4x256xf32>, vector<32x256xf32> -> vector<32x256xf32>
    %38 = arith.addf %29, %37 : vector<32x256xf32>
    %c4 = arith.constant 4 : index
    %c0_27 = arith.constant 0 : index
    %c0_28 = arith.constant 0 : index
    %39 = vector.load %arg6[%c4, %c0_27, %c0_28] : memref<9x1x256xf32, #tpu.memory_space<vmem>>, vector<1x1x256xf32>
    %40 = vector.shape_cast %39 : vector<1x1x256xf32> to vector<1x256xf32>
    %41 = vector.broadcast %40 : vector<1x256xf32> to vector<4x256xf32>
    %42 = arith.mulf %1, %41 : vector<4x256xf32>
    %c4_29 = arith.constant 4 : index
    %c0_30 = arith.constant 0 : index
    %c0_31 = arith.constant 0 : index
    %43 = vector.load %arg2[%c4_29, %c0_30, %c0_31] : memref<9x32x4xf32, #tpu.memory_space<vmem>>, vector<1x32x4xf32>
    %44 = vector.shape_cast %43 : vector<1x32x4xf32> to vector<32x4xf32>
    %cst_32 = arith.constant dense<0.000000e+00> : vector<32x256xf32>
    %45 = tpu.matmul %44, %42, %cst_32 {dimension_numbers = #tpu.dot_dimension_numbers<[1], [0], [0], [1], [0, 0, 1, 1], [], []>} : vector<32x4xf32>, vector<4x256xf32>, vector<32x256xf32> -> vector<32x256xf32>
    %46 = arith.addf %38, %45 : vector<32x256xf32>
    %c255_i32 = arith.constant 255 : i32
    %47 = tpu.dynamic_rotate %1 by %c255_i32 dim 1 : vector<4x256xf32>, i32 -> vector<4x256xf32>
    %c5 = arith.constant 5 : index
    %c0_33 = arith.constant 0 : index
    %c0_34 = arith.constant 0 : index
    %48 = vector.load %arg6[%c5, %c0_33, %c0_34] : memref<9x1x256xf32, #tpu.memory_space<vmem>>, vector<1x1x256xf32>
    %49 = vector.shape_cast %48 : vector<1x1x256xf32> to vector<1x256xf32>
    %50 = vector.broadcast %49 : vector<1x256xf32> to vector<4x256xf32>
    %51 = arith.mulf %47, %50 : vector<4x256xf32>
    %c5_35 = arith.constant 5 : index
    %c0_36 = arith.constant 0 : index
    %c0_37 = arith.constant 0 : index
    %52 = vector.load %arg2[%c5_35, %c0_36, %c0_37] : memref<9x32x4xf32, #tpu.memory_space<vmem>>, vector<1x32x4xf32>
    %53 = vector.shape_cast %52 : vector<1x32x4xf32> to vector<32x4xf32>
    %cst_38 = arith.constant dense<0.000000e+00> : vector<32x256xf32>
    %54 = tpu.matmul %53, %51, %cst_38 {dimension_numbers = #tpu.dot_dimension_numbers<[1], [0], [0], [1], [0, 0, 1, 1], [], []>} : vector<32x4xf32>, vector<4x256xf32>, vector<32x256xf32> -> vector<32x256xf32>
    %55 = arith.addf %46, %54 : vector<32x256xf32>
    %c241_i32 = arith.constant 241 : i32
    %56 = tpu.dynamic_rotate %1 by %c241_i32 dim 1 : vector<4x256xf32>, i32 -> vector<4x256xf32>
    %c6 = arith.constant 6 : index
    %c0_39 = arith.constant 0 : index
    %c0_40 = arith.constant 0 : index
    %57 = vector.load %arg6[%c6, %c0_39, %c0_40] : memref<9x1x256xf32, #tpu.memory_space<vmem>>, vector<1x1x256xf32>
    %58 = vector.shape_cast %57 : vector<1x1x256xf32> to vector<1x256xf32>
    %59 = vector.broadcast %58 : vector<1x256xf32> to vector<4x256xf32>
    %60 = arith.mulf %56, %59 : vector<4x256xf32>
    %c6_41 = arith.constant 6 : index
    %c0_42 = arith.constant 0 : index
    %c0_43 = arith.constant 0 : index
    %61 = vector.load %arg2[%c6_41, %c0_42, %c0_43] : memref<9x32x4xf32, #tpu.memory_space<vmem>>, vector<1x32x4xf32>
    %62 = vector.shape_cast %61 : vector<1x32x4xf32> to vector<32x4xf32>
    %cst_44 = arith.constant dense<0.000000e+00> : vector<32x256xf32>
    %63 = tpu.matmul %62, %60, %cst_44 {dimension_numbers = #tpu.dot_dimension_numbers<[1], [0], [0], [1], [0, 0, 1, 1], [], []>} : vector<32x4xf32>, vector<4x256xf32>, vector<32x256xf32> -> vector<32x256xf32>
    %64 = arith.addf %55, %63 : vector<32x256xf32>
    %c240_i32 = arith.constant 240 : i32
    %65 = tpu.dynamic_rotate %1 by %c240_i32 dim 1 : vector<4x256xf32>, i32 -> vector<4x256xf32>
    %c7 = arith.constant 7 : index
    %c0_45 = arith.constant 0 : index
    %c0_46 = arith.constant 0 : index
    %66 = vector.load %arg6[%c7, %c0_45, %c0_46] : memref<9x1x256xf32, #tpu.memory_space<vmem>>, vector<1x1x256xf32>
    %67 = vector.shape_cast %66 : vector<1x1x256xf32> to vector<1x256xf32>
    %68 = vector.broadcast %67 : vector<1x256xf32> to vector<4x256xf32>
    %69 = arith.mulf %65, %68 : vector<4x256xf32>
    %c7_47 = arith.constant 7 : index
    %c0_48 = arith.constant 0 : index
    %c0_49 = arith.constant 0 : index
    %70 = vector.load %arg2[%c7_47, %c0_48, %c0_49] : memref<9x32x4xf32, #tpu.memory_space<vmem>>, vector<1x32x4xf32>
    %71 = vector.shape_cast %70 : vector<1x32x4xf32> to vector<32x4xf32>
    %cst_50 = arith.constant dense<0.000000e+00> : vector<32x256xf32>
    %72 = tpu.matmul %71, %69, %cst_50 {dimension_numbers = #tpu.dot_dimension_numbers<[1], [0], [0], [1], [0, 0, 1, 1], [], []>} : vector<32x4xf32>, vector<4x256xf32>, vector<32x256xf32> -> vector<32x256xf32>
    %73 = arith.addf %64, %72 : vector<32x256xf32>
    %c239_i32 = arith.constant 239 : i32
    %74 = tpu.dynamic_rotate %1 by %c239_i32 dim 1 : vector<4x256xf32>, i32 -> vector<4x256xf32>
    %c8 = arith.constant 8 : index
    %c0_51 = arith.constant 0 : index
    %c0_52 = arith.constant 0 : index
    %75 = vector.load %arg6[%c8, %c0_51, %c0_52] : memref<9x1x256xf32, #tpu.memory_space<vmem>>, vector<1x1x256xf32>
    %76 = vector.shape_cast %75 : vector<1x1x256xf32> to vector<1x256xf32>
    %77 = vector.broadcast %76 : vector<1x256xf32> to vector<4x256xf32>
    %78 = arith.mulf %74, %77 : vector<4x256xf32>
    %c8_53 = arith.constant 8 : index
    %c0_54 = arith.constant 0 : index
    %c0_55 = arith.constant 0 : index
    %79 = vector.load %arg2[%c8_53, %c0_54, %c0_55] : memref<9x32x4xf32, #tpu.memory_space<vmem>>, vector<1x32x4xf32>
    %80 = vector.shape_cast %79 : vector<1x32x4xf32> to vector<32x4xf32>
    %cst_56 = arith.constant dense<0.000000e+00> : vector<32x256xf32>
    %81 = tpu.matmul %80, %78, %cst_56 {dimension_numbers = #tpu.dot_dimension_numbers<[1], [0], [0], [1], [0, 0, 1, 1], [], []>} : vector<32x4xf32>, vector<4x256xf32>, vector<32x256xf32> -> vector<32x256xf32>
    %82 = arith.addf %73, %81 : vector<32x256xf32>
    %c0_57 = arith.constant 0 : index
    %c0_58 = arith.constant 0 : index
    %83 = vector.load %arg3[%c0_57, %c0_58] : memref<32x1xf32, #tpu.memory_space<vmem>>, vector<32x1xf32>
    %84 = vector.broadcast %83 : vector<32x1xf32> to vector<32x256xf32>
    %85 = arith.addf %82, %84 : vector<32x256xf32>
    %cst_59 = arith.constant 0.000000e+00 : f32
    %86 = vector.broadcast %cst_59 : f32 to vector<32x256xf32>
    %87 = arith.maximumf %85, %86 : vector<32x256xf32>
    %c0_60 = arith.constant 0 : index
    %c0_61 = arith.constant 0 : index
    %88 = vector.load %arg4[%c0_60, %c0_61] : memref<50x32xf32, #tpu.memory_space<vmem>>, vector<50x32xf32>
    %cst_62 = arith.constant dense<0.000000e+00> : vector<50x256xf32>
    %89 = tpu.matmul %88, %87, %cst_62 {dimension_numbers = #tpu.dot_dimension_numbers<[1], [0], [0], [1], [0, 0, 1, 1], [], []>} : vector<50x32xf32>, vector<32x256xf32>, vector<50x256xf32> -> vector<50x256xf32>
    %c0_63 = arith.constant 0 : index
    %c0_64 = arith.constant 0 : index
    %90 = vector.load %arg5[%c0_63, %c0_64] : memref<50x1xf32, #tpu.memory_space<vmem>>, vector<50x1xf32>
    %91 = vector.broadcast %90 : vector<50x1xf32> to vector<50x256xf32>
    %92 = arith.addf %89, %91 : vector<50x256xf32>
    %c0_65 = arith.constant 0 : index
    %c0_66 = arith.constant 0 : index
    %c0_67 = arith.constant 0 : index
    %93 = vector.load %arg7[%c0_65, %c0_66, %c0_67] : memref<1x50x256xf32, #tpu.memory_space<vmem>>, vector<1x50x256xf32>
    %94 = vector.shape_cast %93 : vector<1x50x256xf32> to vector<50x256xf32>
    %95 = vector.shape_cast %92 : vector<50x256xf32> to vector<1x50x256xf32>
    tpu.vector_store %arg7[%c0_65, %c0_66, %c0_67], %95 {strides = array<i32>} : memref<1x50x256xf32, #tpu.memory_space<vmem>>, vector<1x50x256xf32>,
    return
  }
  func.func @transform_0(%arg0: i32) -> (i32, i32, i32) {
    %c0_i32 = arith.constant 0 : i32
    %c0_i32_0 = arith.constant 0 : i32
    %c0_i32_1 = arith.constant 0 : i32
    return %arg0, %c0_i32, %c0_i32_0 : i32, i32, i32
  }
  func.func @transform_1(%arg0: i32) -> (i32, i32, i32) {
    %c0_i32 = arith.constant 0 : i32
    %c0_i32_0 = arith.constant 0 : i32
    %c0_i32_1 = arith.constant 0 : i32
    %c0_i32_2 = arith.constant 0 : i32
    return %c0_i32, %c0_i32_0, %c0_i32_1 : i32, i32, i32
  }
  func.func @transform_2(%arg0: i32) -> (i32, i32) {
    %c0_i32 = arith.constant 0 : i32
    %c0_i32_0 = arith.constant 0 : i32
    %c0_i32_1 = arith.constant 0 : i32
    return %c0_i32, %c0_i32_0 : i32, i32
  }
  func.func @transform_3(%arg0: i32) -> (i32, i32) {
    %c0_i32 = arith.constant 0 : i32
    %c0_i32_0 = arith.constant 0 : i32
    %c0_i32_1 = arith.constant 0 : i32
    return %c0_i32, %c0_i32_0 : i32, i32
  }
  func.func @transform_4(%arg0: i32) -> (i32, i32) {
    %c0_i32 = arith.constant 0 : i32
    %c0_i32_0 = arith.constant 0 : i32
    %c0_i32_1 = arith.constant 0 : i32
    return %c0_i32, %c0_i32_0 : i32, i32
  }
  func.func @transform_5(%arg0: i32) -> (i32, i32, i32) {
    %c0_i32 = arith.constant 0 : i32
    %c0_i32_0 = arith.constant 0 : i32
    %c0_i32_1 = arith.constant 0 : i32
    %c0_i32_2 = arith.constant 0 : i32
    return %c0_i32, %c0_i32_0, %c0_i32_1 : i32, i32, i32
  }
  func.func @transform_6(%arg0: i32) -> (i32, i32, i32) {
    %c0_i32 = arith.constant 0 : i32
    %c0_i32_0 = arith.constant 0 : i32
    %c0_i32_1 = arith.constant 0 : i32
    return %arg0, %c0_i32, %c0_i32_0 : i32, i32, i32
  }
}

</mosaic_0001>

<llo_original>
// kernel: tpu_custom_call.1
$region0: #{tpu_custom_call.1}
  #allocation0 [shape = 'u32[]', space=smem, size = 0x4, offset = 0x4, fixed_abs, tag = 'smem constant byte address 0x4 - core index']
  #allocation1 [shape = 'u32[72,128]{1,0:T(1,128)}', space=vmem, size = 0x9000, scoped, tag = 'internal scratch']
  %s0 = inlined_call_operand.vmem [shape: f32[2,4,256], index: 0, kind: input, shape index: {}]
  %s1 = inlined_call_operand.vmem [shape: f32[9,32,4], index: 1, kind: input, shape index: {}]
  %s2 = inlined_call_operand.vmem [shape: f32[32,1], index: 2, kind: input, shape index: {}]
  %s3 = inlined_call_operand.vmem [shape: f32[50,32], index: 3, kind: input, shape index: {}]
  %s4 = inlined_call_operand.vmem [shape: f32[50,1], index: 4, kind: input, shape index: {}]
  %s5 = inlined_call_operand.vmem [shape: f32[9,1,256], index: 5, kind: input, shape index: {}]
  %s6 = inlined_call_operand.vmem [shape: f32[2,50,256], index: 6, kind: output, shape index: {}]
  %s7 = sld [smem:[#allocation0]]
  $region57: #{tpu_custom_call.1} parent=0
    _
  %s9 = ssub.s32 1, %s7
  %s10 = scalar_select 0, %s9, %s7
  loop: start=0, step=1, limit=4
  $region2: #{tpu_custom_call.1} parent=0 // loop_pre_header
    _
  $region3: #{tpu_custom_call.1} parent=0 // loop_header
    %s12 = sphi 0, %s16
    %p13 = scmp.ge.s32.totalorder %s12, 4
    %s22 = sphi 0, %s24
    %s25 = sphi 0, %s22
    %s26 = sphi 0, %s25
    %s42 = sphi 0, %s26
    %s46 = sphi 0, %s46
    %s48 = sphi 0, %s46
    %s49 = sphi 0, %s48
    %s63 = sphi 0, %s49
    %s67 = sphi 0, %s67
    %s69 = sphi 0, %s67
    %s70 = sphi 0, %s69
    %s84 = sphi 0, %s70
    %s88 = sphi 0, %s88
    %s90 = sphi 0, %s88
    %s91 = sphi 0, %s90
    %s105 = sphi 0, %s91
    %s109 = sphi 0, %s109
    %s111 = sphi 0, %s109
    %s112 = sphi 0, %s111
    %s126 = sphi 0, %s112
    %s130 = sphi 0, %s130
    %s132 = sphi 0, %s130
    %s133 = sphi 0, %s132
    %s147 = sphi 0, %s133
    %s153 = sphi 0, %s155
    %s156 = sphi 0, %s153
    %s157 = sphi 0, %s156
    %s173 = sphi 0, %s157
  $region4: #{tpu_custom_call.1} parent=0 // loop_header_branch
    %15 = sbr.rel (%p13) target = $region8
  $region5: #{tpu_custom_call.1} parent=0 // loop_body
    %s17 = ssub.s32 %s12, 1
    %s18 = ssub.s32 %s12, 2
    %s19 = sadd.s32 %s12, 1
    %s20 = ssub.s32 %s12, %s19
    %p21 = scmp.eq.s32.totalorder %s20, 0
    %s23 = sadd.s32 %s22, 1
    %s24 = scalar_select %p21, %s22, %s23
    %p27 = pneg %p21
    %p28 = scmp.eq.s32.totalorder %s12, 1
    %p29 = por %p27, %p28
    %p30 = scmp.ne.s32.totalorder %s22, %s25
    %p31 = scmp.eq.s32.totalorder %s12, 0
    %p32 = por %p30, %p31
    %p33 = scmp.ne.s32.totalorder %s22, %s25
    %p34 = scmp.eq.s32.totalorder %s17, 1
    %p35 = por %p33, %p34
    %p36 = scmp.ne.s32.totalorder %s25, %s26
    %p37 = scmp.eq.s32.totalorder %s17, 0
    %p38 = por %p36, %p37
    %p39 = scmp.ne.s32.totalorder %s25, %s26
    %p40 = scmp.eq.s32.totalorder %s18, 1
    %p41 = por %p39, %p40
    %p43 = scmp.ne.s32.totalorder %s26, %s42
    %p44 = scmp.eq.s32.totalorder %s18, 0
    %p45 = por %p43, %p44
    %s47 = sadd.s32 %s46, 1
    %p50 = scmp.eq.s32.totalorder %s12, 1
    %p51 = scmp.ne.s32.totalorder %s46, %s48
    %p52 = scmp.eq.s32.totalorder %s12, 0
    %p53 = por %p51, %p52
    %p54 = scmp.ne.s32.totalorder %s46, %s48
    %p55 = scmp.eq.s32.totalorder %s17, 1
    %p56 = por %p54, %p55
    %p57 = scmp.ne.s32.totalorder %s48, %s49
    %p58 = scmp.eq.s32.totalorder %s17, 0
    %p59 = por %p57, %p58
    %p60 = scmp.ne.s32.totalorder %s48, %s49
    %p61 = scmp.eq.s32.totalorder %s18, 1
    %p62 = por %p60, %p61
    %p64 = scmp.ne.s32.totalorder %s49, %s63
    %p65 = scmp.eq.s32.totalorder %s18, 0
    %p66 = por %p64, %p65
    %s68 = sadd.s32 %s67, 1
    %p71 = scmp.eq.s32.totalorder %s12, 1
    %p72 = scmp.ne.s32.totalorder %s67, %s69
    %p73 = scmp.eq.s32.totalorder %s12, 0
    %p74 = por %p72, %p73
    %p75 = scmp.ne.s32.totalorder %s67, %s69
    %p76 = scmp.eq.s32.totalorder %s17, 1
    %p77 = por %p75, %p76
    %p78 = scmp.ne.s32.totalorder %s69, %s70
    %p79 = scmp.eq.s32.totalorder %s17, 0
    %p80 = por %p78, %p79
    %p81 = scmp.ne.s32.totalorder %s69, %s70
    %p82 = scmp.eq.s32.totalorder %s18, 1
    %p83 = por %p81, %p82
    %p85 = scmp.ne.s32.totalorder %s70, %s84
    %p86 = scmp.eq.s32.totalorder %s18, 0
    %p87 = por %p85, %p86
    %s89 = sadd.s32 %s88, 1
    %p92 = scmp.eq.s32.totalorder %s12, 1
    %p93 = scmp.ne.s32.totalorder %s88, %s90
    %p94 = scmp.eq.s32.totalorder %s12, 0
    %p95 = por %p93, %p94
    %p96 = scmp.ne.s32.totalorder %s88, %s90
    %p97 = scmp.eq.s32.totalorder %s17, 1
    %p98 = por %p96, %p97
    %p99 = scmp.ne.s32.totalorder %s90, %s91
    %p100 = scmp.eq.s32.totalorder %s17, 0
    %p101 = por %p99, %p100
    %p102 = scmp.ne.s32.totalorder %s90, %s91
    %p103 = scmp.eq.s32.totalorder %s18, 1
    %p104 = por %p102, %p103
    %p106 = scmp.ne.s32.totalorder %s91, %s105
    %p107 = scmp.eq.s32.totalorder %s18, 0
    %p108 = por %p106, %p107
    %s110 = sadd.s32 %s109, 1
    %p113 = scmp.eq.s32.totalorder %s12, 1
    %p114 = scmp.ne.s32.totalorder %s109, %s111
    %p115 = scmp.eq.s32.totalorder %s12, 0
    %p116 = por %p114, %p115
    %p117 = scmp.ne.s32.totalorder %s109, %s111
    %p118 = scmp.eq.s32.totalorder %s17, 1
    %p119 = por %p117, %p118
    %p120 = scmp.ne.s32.totalorder %s111, %s112
    %p121 = scmp.eq.s32.totalorder %s17, 0
    %p122 = por %p120, %p121
    %p123 = scmp.ne.s32.totalorder %s111, %s112
    %p124 = scmp.eq.s32.totalorder %s18, 1
    %p125 = por %p123, %p124
    %p127 = scmp.ne.s32.totalorder %s112, %s126
    %p128 = scmp.eq.s32.totalorder %s18, 0
    %p129 = por %p127, %p128
    %s131 = sadd.s32 %s130, 1
    %p134 = scmp.eq.s32.totalorder %s12, 1
    %p135 = scmp.ne.s32.totalorder %s130, %s132
    %p136 = scmp.eq.s32.totalorder %s12, 0
    %p137 = por %p135, %p136
    %p138 = scmp.ne.s32.totalorder %s130, %s132
    %p139 = scmp.eq.s32.totalorder %s17, 1
    %p140 = por %p138, %p139
    %p141 = scmp.ne.s32.totalorder %s132, %s133
    %p142 = scmp.eq.s32.totalorder %s17, 0
    %p143 = por %p141, %p142
    %p144 = scmp.ne.s32.totalorder %s132, %s133
    %p145 = scmp.eq.s32.totalorder %s18, 1
    %p146 = por %p144, %p145
    %p148 = scmp.ne.s32.totalorder %s133, %s147
    %p149 = scmp.eq.s32.totalorder %s18, 0
    %p150 = por %p148, %p149
    %s151 = ssub.s32 %s12, %s19
    %p152 = scmp.eq.s32.totalorder %s151, 0
    %s154 = sadd.s32 %s153, 1
    %s155 = scalar_select %p152, %s153, %s154
    %p158 = pneg %p152
    %p159 = scmp.eq.s32.totalorder %s12, 1
    %p160 = por %p158, %p159
    %p161 = scmp.ne.s32.totalorder %s153, %s156
    %p162 = scmp.eq.s32.totalorder %s12, 0
    %p163 = por %p161, %p162
    %p164 = scmp.ne.s32.totalorder %s153, %s156
    %p165 = scmp.eq.s32.totalorder %s17, 1
    %p166 = por %p164, %p165
    %p167 = scmp.ne.s32.totalorder %s156, %s157
    %p168 = scmp.eq.s32.totalorder %s17, 0
    %p169 = por %p167, %p168
    %p170 = scmp.ne.s32.totalorder %s156, %s157
    %p171 = scmp.eq.s32.totalorder %s18, 1
    %p172 = por %p170, %p171
    %p174 = scmp.ne.s32.totalorder %s157, %s173
    %p175 = scmp.eq.s32.totalorder %s18, 0
    %p176 = por %p174, %p175
    %p177 = scmp.le.s32.totalorder 1, %s12
    %p178 = scmp.lt.s32.totalorder %s12, 3
    %p179 = pnand %p177, %p178
    %p180 = pneg %p179
    // Predicated region
    $region9: #{tpu_custom_call.1} parent=5 // pred_check
      _
    $region10: #{tpu_custom_call.1} parent=5 // pred_check_branch
      %182 = sbr.rel (%p179) target = $region12
    $region11: #{tpu_custom_call.1} parent=5 // pred_region
      %s183 = ssub.s32 %s12, 1
      // Predicated region
      $region13: #{tpu_custom_call.1} parent=11 // pred_check
        %p184 = pneg %p59
      $region14: #{tpu_custom_call.1} parent=11 // pred_check_branch
        %186 = sbr.rel (%p184) target = $region16
      $region15: #{tpu_custom_call.1} parent=11 // pred_region
        _
      $region16: #{tpu_custom_call.1} parent=11 // pred_fallthru
        _
      // Predicated region
      $region17: #{tpu_custom_call.1} parent=11 // pred_check
        %p187 = pneg %p80
      $region18: #{tpu_custom_call.1} parent=11 // pred_check_branch
        %189 = sbr.rel (%p187) target = $region20
      $region19: #{tpu_custom_call.1} parent=11 // pred_region
        _
      $region20: #{tpu_custom_call.1} parent=11 // pred_fallthru
        _
      // Predicated region
      $region21: #{tpu_custom_call.1} parent=11 // pred_check
        %p190 = pneg %p101
      $region22: #{tpu_custom_call.1} parent=11 // pred_check_branch
        %192 = sbr.rel (%p190) target = $region24
      $region23: #{tpu_custom_call.1} parent=11 // pred_region
        _
      $region24: #{tpu_custom_call.1} parent=11 // pred_fallthru
        _
      // Predicated region
      $region25: #{tpu_custom_call.1} parent=11 // pred_check
        %p193 = pneg %p122
      $region26: #{tpu_custom_call.1} parent=11 // pred_check_branch
        %195 = sbr.rel (%p193) target = $region28
      $region27: #{tpu_custom_call.1} parent=11 // pred_region
        _
      $region28: #{tpu_custom_call.1} parent=11 // pred_fallthru
        _
      // Predicated region
      $region29: #{tpu_custom_call.1} parent=11 // pred_check
        %p196 = pneg %p143
      $region30: #{tpu_custom_call.1} parent=11 // pred_check_branch
        %198 = sbr.rel (%p196) target = $region32
      $region31: #{tpu_custom_call.1} parent=11 // pred_region
        _
      $region32: #{tpu_custom_call.1} parent=11 // pred_fallthru
        _
    $region12: #{tpu_custom_call.1} parent=5 // pred_fallthru
      _
    %p199 = scmp.lt.s32.totalorder %s12, 2
    // Predicated region
    $region33: #{tpu_custom_call.1} parent=5 // pred_check
      %p200 = pneg %p199
    $region34: #{tpu_custom_call.1} parent=5 // pred_check_branch
      %202 = sbr.rel (%p200) target = $region36
    $region35: #{tpu_custom_call.1} parent=5 // pred_region
      // Predicated region
      $region37: #{tpu_custom_call.1} parent=35 // pred_check
        %p203 = pneg %p32
      $region38: #{tpu_custom_call.1} parent=35 // pred_check_branch
        %205 = sbr.rel (%p203) target = $region40
      $region39: #{tpu_custom_call.1} parent=35 // pred_region
        %p206 = scmp.lt.s32.totalorder %s12, 1
        %s207 = scalar_select %p206, %s12, 1
        %s208 = smul.addr %s207, 2
        %s209 = smul.addr %s208, 4
        %s210 = scalar_lea.vmem %s0, %s209
      $region40: #{tpu_custom_call.1} parent=35 // pred_fallthru
        _
    $region36: #{tpu_custom_call.1} parent=5 // pred_fallthru
      _
    %p211 = scmp.le.s32.totalorder 1, %s12
    %p212 = scmp.lt.s32.totalorder %s12, 3
    %p213 = pnand %p211, %p212
    %p214 = pneg %p213
    // Predicated region
    $region41: #{tpu_custom_call.1} parent=5 // pred_check
      _
    $region42: #{tpu_custom_call.1} parent=5 // pred_check_branch
      %216 = sbr.rel (%p213) target = $region44
    $region43: #{tpu_custom_call.1} parent=5 // pred_region
      %s217 = ssub.s32 %s12, 1
      %p218 = scmp.lt.s32.totalorder %s17, 1
      %s219 = scalar_select %p218, %s17, 1
      %s220 = smul.addr %s219, 2
      %s221 = smul.addr %s220, 4
      %s222 = scalar_lea.vmem %s0, %s221
      %p223 = pneg %p38
      %p224 = pneg %p35
      %p225 = pneg %p59
      %p226 = pneg %p56
      %p227 = pneg %p80
      %p228 = pneg %p77
      %p229 = pneg %p101
      %p230 = pneg %p98
      %p231 = pneg %p122
      %p232 = pneg %p119
      %p233 = pneg %p143
      %p234 = pneg %p140
      %p235 = pneg %p169
      %p236 = pneg %p166
      %p237 = scmp.lt.s32.totalorder %s17, 1
      %s238 = scalar_select %p237, %s17, 1
      %s239 = smul.addr %s238, 14
      %s240 = smul.addr %s239, 8
      %s241 = scalar_lea.vmem %s6, %s240
      %p242 = scmp.lt.s32.totalorder %s17, 1
      %s243 = scalar_select %p242, %s17, 1
      %s244 = smul.addr %s243, 2
      %s245 = smul.addr %s244, 4
      %s246 = scalar_lea.vmem %s0, %s245
      %p247 = scmp.lt.s32.totalorder %s17, 1
      %s248 = scalar_select %p247, %s17, 1
      %s249 = smul.addr %s248, 14
      %s250 = smul.addr %s249, 8
      %s251 = scalar_lea.vmem %s6, %s250
      %v252 = vld [vmem:[%s246] sm:$0xff]
      %254 = vst [vmem:[#allocation1] ss:$2 sm:$0xff] %v252
      %v255 = vld.sshfl [vmem:[#allocation1] sm:$0xff pattern:$0x75316420]
      %v256 = vld.sshfl [vmem:[#allocation1 + $0x8] sm:$0xff pattern:$0x75316420]
      %259 = vrot.lane.b32.xlu0 %v255, 17
      %v260 = vpop.permute.xlu0 %259
      %261 = vrot.lane.b32.xlu0 %v256, 17
      %v262 = vpop.permute.xlu0 %261
      %v263 = vlaneseq
      %v264 = vand.u32 %v263, 127
      %vm265 = vcmp.lt.s32.totalorder %v264, 17
      %v266 = vsel %vm265, %v260, %v262
      %v267 = vsel %vm265, %v262, %v260
      %v268 = vld [vmem:[%s5] sm:$0x3]
      %v270 = vperm.slane %v268, 0
      %v271 = vperm.slane %v268, 1
      %v274 = vmul.f32 %v267, %v270
      %v275 = vmul.f32 %v266, %v271
      %v276 = vld [vmem:[%s1] sm:$0xff]
      %v277 = vld [vmem:[%s1 + $0x8] sm:$0xff]
      %v278 = vld [vmem:[%s1 + $0x10] sm:$0xff]
      %v279 = vld [vmem:[%s1 + $0x18] sm:$0xff]
      %280 = vst [vmem:[#allocation1] ss:$2 sm:$0xff] %v252
      %v281 = vld.sshfl [vmem:[#allocation1] sm:$0xff pattern:$0x75316420]
      %v282 = vld.sshfl [vmem:[#allocation1 + $0x8] sm:$0xff pattern:$0x75316420]
      %285 = vrot.lane.b32.xlu0 %v281, 16
      %v286 = vpop.permute.xlu0 %285
      %287 = vrot.lane.b32.xlu0 %v282, 16
      %v288 = vpop.permute.xlu0 %287
      %vm289 = vcmp.lt.s32.totalorder %v264, 16
      %v290 = vsel %vm289, %v286, %v288
      %v291 = vsel %vm289, %v288, %v286
      %s292 = scalar_lea.vmem %s5, 2
      %v293 = vld [vmem:[%s292] sm:$0x3]
      %v295 = vperm.slane %v293, 0
      %v296 = vperm.slane %v293, 1
      %v299 = vmul.f32 %v291, %v295
      %v300 = vmul.f32 %v290, %v296
      %s301 = scalar_lea.vmem %s1, 32
      %v302 = vld [vmem:[%s301] sm:$0xff]
      %v303 = vld [vmem:[%s301 + $0x8] sm:$0xff]
      %v304 = vld [vmem:[%s301 + $0x10] sm:$0xff]
      %v305 = vld [vmem:[%s301 + $0x18] sm:$0xff]
      %vm306 = vcmask 31744
      %v308 = vsel %vm306, %v302, 0
      %v311 = vsel %vm306, %v303, 0
      %v314 = vsel %vm306, %v304, 0
      %v317 = vsel %vm306, %v305, 0
      %vm319 = vcmask 1043456
      %v321 = vsel %vm319, %v299, 0
      %v324 = vsel %vm319, %v300, 0
      %326 = vmatpush.msra.mxu0 0.0
      %327 = vmatpush.msra.mxu0 0.0
      %328 = vmatpush.msra.mxu0 0.0
      %329 = vmatpush.msra.mxu0 0.0
      %330 = vmatpush.msra.mxu0 0.0
      %331 = vmatpush.msra.mxu0 0.0
      %332 = vmatpush.msra.mxu0 0.0
      %333 = vmatpush.msra.mxu0 0.0
      %334 = vmatpush.msra.mxu0 0.0
      %335 = vmatpush.msra.mxu0 0.0
      %336 = vmatpush.msra.mxu0 0.0
      %337 = vmatpush.msra.mxu0 0.0
      %338 = vmatpush.msra.mxu0 0.0
      %339 = vmatpush.msra.mxu0 0.0
      %340 = vmatpush.msra.mxu0 0.0
      %341 = vmatpush.msra.mxu0 %v321
      %342 = vmatmul.f32.gmra.mxu0 %v308
      %v343 = vpop.f32.mrf.mxu0
      %v344 = vadd.f32 0.0, %v343
      %345 = vmatmul.f32.gmra.mxu0 %v311
      %v346 = vpop.f32.mrf.mxu0
      %v347 = vadd.f32 0.0, %v346
      %348 = vmatmul.f32.gmra.mxu0 %v314
      %v349 = vpop.f32.mrf.mxu0
      %v350 = vadd.f32 0.0, %v349
      %351 = vmatmul.f32.gmra.mxu0 %v317
      %v352 = vpop.f32.mrf.mxu0
      %v353 = vadd.f32 0.0, %v352
      %354 = vdwg.mxu0
      %355 = vmatpush.msra.mxu0 0.0
      %356 = vmatpush.msra.mxu0 0.0
      %357 = vmatpush.msra.mxu0 0.0
      %358 = vmatpush.msra.mxu0 0.0
      %359 = vmatpush.msra.mxu0 0.0
      %360 = vmatpush.msra.mxu0 0.0
      %361 = vmatpush.msra.mxu0 0.0
      %362 = vmatpush.msra.mxu0 0.0
      %363 = vmatpush.msra.mxu0 0.0
      %364 = vmatpush.msra.mxu0 0.0
      %365 = vmatpush.msra.mxu0 0.0
      %366 = vmatpush.msra.mxu0 0.0
      %367 = vmatpush.msra.mxu0 0.0
      %368 = vmatpush.msra.mxu0 0.0
      %369 = vmatpush.msra.mxu0 0.0
      %370 = vmatpush.msra.mxu0 %v324
      %371 = vmatmul.f32.gmra.mxu0 %v308
      %v372 = vpop.f32.mrf.mxu0
      %v373 = vadd.f32 0.0, %v372
      %374 = vmatmul.f32.gmra.mxu0 %v311
      %v375 = vpop.f32.mrf.mxu0
      %v376 = vadd.f32 0.0, %v375
      %377 = vmatmul.f32.gmra.mxu0 %v314
      %v378 = vpop.f32.mrf.mxu0
      %v379 = vadd.f32 0.0, %v378
      %380 = vmatmul.f32.gmra.mxu0 %v317
      %v381 = vpop.f32.mrf.mxu0
      %v382 = vadd.f32 0.0, %v381
      %383 = vdwg.mxu0
      %v385 = vsel %vm306, %v276, 0
      %v388 = vsel %vm306, %v277, 0
      %v391 = vsel %vm306, %v278, 0
      %v394 = vsel %vm306, %v279, 0
      %v397 = vsel %vm319, %v274, 0
      %v400 = vsel %vm319, %v275, 0
      %402 = vmatpush.msra.mxu0 0.0
      %403 = vmatpush.msra.mxu0 0.0
      %404 = vmatpush.msra.mxu0 0.0
      %405 = vmatpush.msra.mxu0 0.0
      %406 = vmatpush.msra.mxu0 0.0
      %407 = vmatpush.msra.mxu0 0.0
      %408 = vmatpush.msra.mxu0 0.0
      %409 = vmatpush.msra.mxu0 0.0
      %410 = vmatpush.msra.mxu0 0.0
      %411 = vmatpush.msra.mxu0 0.0
      %412 = vmatpush.msra.mxu0 0.0
      %413 = vmatpush.msra.mxu0 0.0
      %414 = vmatpush.msra.mxu0 0.0
      %415 = vmatpush.msra.mxu0 0.0
      %416 = vmatpush.msra.mxu0 0.0
      %417 = vmatpush.msra.mxu0 %v397
      %418 = vmatmul.f32.gmra.mxu0 %v385
      %v419 = vpop.f32.mrf.mxu0
      %v420 = vadd.f32 %v344, %v419
      %421 = vmatmul.f32.gmra.mxu0 %v388
      %v422 = vpop.f32.mrf.mxu0
      %v423 = vadd.f32 %v347, %v422
      %424 = vmatmul.f32.gmra.mxu0 %v391
      %v425 = vpop.f32.mrf.mxu0
      %v426 = vadd.f32 %v350, %v425
      %427 = vmatmul.f32.gmra.mxu0 %v394
      %v428 = vpop.f32.mrf.mxu0
      %v429 = vadd.f32 %v353, %v428
      %430 = vdwg.mxu0
      %431 = vmatpush.msra.mxu0 0.0
      %432 = vmatpush.msra.mxu0 0.0
      %433 = vmatpush.msra.mxu0 0.0
      %434 = vmatpush.msra.mxu0 0.0
      %435 = vmatpush.msra.mxu0 0.0
      %436 = vmatpush.msra.mxu0 0.0
      %437 = vmatpush.msra.mxu0 0.0
      %438 = vmatpush.msra.mxu0 0.0
      %439 = vmatpush.msra.mxu0 0.0
      %440 = vmatpush.msra.mxu0 0.0
      %441 = vmatpush.msra.mxu0 0.0
      %442 = vmatpush.msra.mxu0 0.0
      %443 = vmatpush.msra.mxu0 0.0
      %444 = vmatpush.msra.mxu0 0.0
      %445 = vmatpush.msra.mxu0 0.0
      %446 = vmatpush.msra.mxu0 %v400
      %447 = vmatmul.f32.gmra.mxu0 %v385
      %v448 = vpop.f32.mrf.mxu0
      %v449 = vadd.f32 %v373, %v448
      %450 = vmatmul.f32.gmra.mxu0 %v388
      %v451 = vpop.f32.mrf.mxu0
      %v452 = vadd.f32 %v376, %v451
      %453 = vmatmul.f32.gmra.mxu0 %v391
      %v454 = vpop.f32.mrf.mxu0
      %v455 = vadd.f32 %v379, %v454
      %456 = vmatmul.f32.gmra.mxu0 %v394
      %v457 = vpop.f32.mrf.mxu0
      %v458 = vadd.f32 %v382, %v457
      %459 = vdwg.mxu0
      %460 = vst [vmem:[#allocation1] ss:$2 sm:$0xff] %v252
      %v461 = vld.sshfl [vmem:[#allocation1] sm:$0xff pattern:$0x75316420]
      %v462 = vld.sshfl [vmem:[#allocation1 + $0x8] sm:$0xff pattern:$0x75316420]
      %465 = vrot.lane.b32.xlu0 %v461, 15
      %v466 = vpop.permute.xlu0 %465
      %467 = vrot.lane.b32.xlu0 %v462, 15
      %v468 = vpop.permute.xlu0 %467
      %vm469 = vcmp.lt.s32.totalorder %v264, 15
      %v470 = vsel %vm469, %v466, %v468
      %v471 = vsel %vm469, %v468, %v466
      %s472 = scalar_lea.vmem %s5, 4
      %v473 = vld [vmem:[%s472] sm:$0x3]
      %v475 = vperm.slane %v473, 0
      %v476 = vperm.slane %v473, 1
      %v479 = vmul.f32 %v471, %v475
      %v480 = vmul.f32 %v470, %v476
      %s481 = scalar_lea.vmem %s1, 64
      %v482 = vld [vmem:[%s481] sm:$0xff]
      %v483 = vld [vmem:[%s481 + $0x8] sm:$0xff]
      %v484 = vld [vmem:[%s481 + $0x10] sm:$0xff]
      %v485 = vld [vmem:[%s481 + $0x18] sm:$0xff]
      %v487 = vsel %vm306, %v482, 0
      %v490 = vsel %vm306, %v483, 0
      %v493 = vsel %vm306, %v484, 0
      %v496 = vsel %vm306, %v485, 0
      %v499 = vsel %vm319, %v479, 0
      %v502 = vsel %vm319, %v480, 0
      %504 = vmatpush.msra.mxu0 0.0
      %505 = vmatpush.msra.mxu0 0.0
      %506 = vmatpush.msra.mxu0 0.0
      %507 = vmatpush.msra.mxu0 0.0
      %508 = vmatpush.msra.mxu0 0.0
      %509 = vmatpush.msra.mxu0 0.0
      %510 = vmatpush.msra.mxu0 0.0
      %511 = vmatpush.msra.mxu0 0.0
      %512 = vmatpush.msra.mxu0 0.0
      %513 = vmatpush.msra.mxu0 0.0
      %514 = vmatpush.msra.mxu0 0.0
      %515 = vmatpush.msra.mxu0 0.0
      %516 = vmatpush.msra.mxu0 0.0
      %517 = vmatpush.msra.mxu0 0.0
      %518 = vmatpush.msra.mxu0 0.0
      %519 = vmatpush.msra.mxu0 %v499
      %520 = vmatmul.f32.gmra.mxu0 %v487
      %v521 = vpop.f32.mrf.mxu0
      %v522 = vadd.f32 0.0, %v521
      %523 = vmatmul.f32.gmra.mxu0 %v490
      %v524 = vpop.f32.mrf.mxu0
      %v525 = vadd.f32 0.0, %v524
      %526 = vmatmul.f32.gmra.mxu0 %v493
      %v527 = vpop.f32.mrf.mxu0
      %v528 = vadd.f32 0.0, %v527
      %529 = vmatmul.f32.gmra.mxu0 %v496
      %v530 = vpop.f32.mrf.mxu0
      %v531 = vadd.f32 0.0, %v530
      %532 = vdwg.mxu0
      %533 = vmatpush.msra.mxu0 0.0
      %534 = vmatpush.msra.mxu0 0.0
      %535 = vmatpush.msra.mxu0 0.0
      %536 = vmatpush.msra.mxu0 0.0
      %537 = vmatpush.msra.mxu0 0.0
      %538 = vmatpush.msra.mxu0 0.0
      %539 = vmatpush.msra.mxu0 0.0
      %540 = vmatpush.msra.mxu0 0.0
      %541 = vmatpush.msra.mxu0 0.0
      %542 = vmatpush.msra.mxu0 0.0
      %543 = vmatpush.msra.mxu0 0.0
      %544 = vmatpush.msra.mxu0 0.0
      %545 = vmatpush.msra.mxu0 0.0
      %546 = vmatpush.msra.mxu0 0.0
      %547 = vmatpush.msra.mxu0 0.0
      %548 = vmatpush.msra.mxu0 %v502
      %549 = vmatmul.f32.gmra.mxu0 %v487
      %v550 = vpop.f32.mrf.mxu0
      %v551 = vadd.f32 0.0, %v550
      %552 = vmatmul.f32.gmra.mxu0 %v490
      %v553 = vpop.f32.mrf.mxu0
      %v554 = vadd.f32 0.0, %v553
      %555 = vmatmul.f32.gmra.mxu0 %v493
      %v556 = vpop.f32.mrf.mxu0
      %v557 = vadd.f32 0.0, %v556
      %558 = vmatmul.f32.gmra.mxu0 %v496
      %v559 = vpop.f32.mrf.mxu0
      %v560 = vadd.f32 0.0, %v559
      %561 = vdwg.mxu0
      %v562 = vadd.f32 %v420, %v522
      %v563 = vadd.f32 %v449, %v551
      %v564 = vadd.f32 %v423, %v525
      %v565 = vadd.f32 %v452, %v554
      %v566 = vadd.f32 %v426, %v528
      %v567 = vadd.f32 %v455, %v557
      %v568 = vadd.f32 %v429, %v531
      %v569 = vadd.f32 %v458, %v560
      %570 = vst [vmem:[#allocation1] ss:$2 sm:$0xff] %v252
      %v571 = vld.sshfl [vmem:[#allocation1] sm:$0xff pattern:$0x75316420]
      %v572 = vld.sshfl [vmem:[#allocation1 + $0x8] sm:$0xff pattern:$0x75316420]
      %575 = vrot.lane.b32.xlu0 %v571, 1
      %v576 = vpop.permute.xlu0 %575
      %577 = vrot.lane.b32.xlu0 %v572, 1
      %v578 = vpop.permute.xlu0 %577
      %vm579 = vcmp.lt.s32.totalorder %v264, 1
      %v580 = vsel %vm579, %v576, %v578
      %v581 = vsel %vm579, %v578, %v576
      %s582 = scalar_lea.vmem %s5, 6
      %v583 = vld [vmem:[%s582] sm:$0x3]
      %v585 = vperm.slane %v583, 0
      %v586 = vperm.slane %v583, 1
      %v589 = vmul.f32 %v581, %v585
      %v590 = vmul.f32 %v580, %v586
      %s591 = scalar_lea.vmem %s1, 96
      %v592 = vld [vmem:[%s591] sm:$0xff]
      %v593 = vld [vmem:[%s591 + $0x8] sm:$0xff]
      %v594 = vld [vmem:[%s591 + $0x10] sm:$0xff]
      %v595 = vld [vmem:[%s591 + $0x18] sm:$0xff]
      %v597 = vsel %vm306, %v592, 0
      %v600 = vsel %vm306, %v593, 0
      %v603 = vsel %vm306, %v594, 0
      %v606 = vsel %vm306, %v595, 0
      %v609 = vsel %vm319, %v589, 0
      %v612 = vsel %vm319, %v590, 0
      %614 = vmatpush.msra.mxu0 0.0
      %615 = vmatpush.msra.mxu0 0.0
      %616 = vmatpush.msra.mxu0 0.0
      %617 = vmatpush.msra.mxu0 0.0
      %618 = vmatpush.msra.mxu0 0.0
      %619 = vmatpush.msra.mxu0 0.0
      %620 = vmatpush.msra.mxu0 0.0
      %621 = vmatpush.msra.mxu0 0.0
      %622 = vmatpush.msra.mxu0 0.0
      %623 = vmatpush.msra.mxu0 0.0
      %624 = vmatpush.msra.mxu0 0.0
      %625 = vmatpush.msra.mxu0 0.0
      %626 = vmatpush.msra.mxu0 0.0
      %627 = vmatpush.msra.mxu0 0.0
      %628 = vmatpush.msra.mxu0 0.0
      %629 = vmatpush.msra.mxu0 %v609
      %630 = vmatmul.f32.gmra.mxu0 %v597
      %v631 = vpop.f32.mrf.mxu0
      %v632 = vadd.f32 0.0, %v631
      %633 = vmatmul.f32.gmra.mxu0 %v600
      %v634 = vpop.f32.mrf.mxu0
      %v635 = vadd.f32 0.0, %v634
      %636 = vmatmul.f32.gmra.mxu0 %v603
      %v637 = vpop.f32.mrf.mxu0
      %v638 = vadd.f32 0.0, %v637
      %639 = vmatmul.f32.gmra.mxu0 %v606
      %v640 = vpop.f32.mrf.mxu0
      %v641 = vadd.f32 0.0, %v640
      %642 = vdwg.mxu0
      %643 = vmatpush.msra.mxu0 0.0
      %644 = vmatpush.msra.mxu0 0.0
      %645 = vmatpush.msra.mxu0 0.0
      %646 = vmatpush.msra.mxu0 0.0
      %647 = vmatpush.msra.mxu0 0.0
      %648 = vmatpush.msra.mxu0 0.0
      %649 = vmatpush.msra.mxu0 0.0
      %650 = vmatpush.msra.mxu0 0.0
      %651 = vmatpush.msra.mxu0 0.0
      %652 = vmatpush.msra.mxu0 0.0
      %653 = vmatpush.msra.mxu0 0.0
      %654 = vmatpush.msra.mxu0 0.0
      %655 = vmatpush.msra.mxu0 0.0
      %656 = vmatpush.msra.mxu0 0.0
      %657 = vmatpush.msra.mxu0 0.0
      %658 = vmatpush.msra.mxu0 %v612
      %659 = vmatmul.f32.gmra.mxu0 %v597
      %v660 = vpop.f32.mrf.mxu0
      %v661 = vadd.f32 0.0, %v660
      %662 = vmatmul.f32.gmra.mxu0 %v600
      %v663 = vpop.f32.mrf.mxu0
      %v664 = vadd.f32 0.0, %v663
      %665 = vmatmul.f32.gmra.mxu0 %v603
      %v666 = vpop.f32.mrf.mxu0
      %v667 = vadd.f32 0.0, %v666
      %668 = vmatmul.f32.gmra.mxu0 %v606
      %v669 = vpop.f32.mrf.mxu0
      %v670 = vadd.f32 0.0, %v669
      %671 = vdwg.mxu0
      %v672 = vadd.f32 %v562, %v632
      %v673 = vadd.f32 %v563, %v661
      %v674 = vadd.f32 %v564, %v635
      %v675 = vadd.f32 %v565, %v664
      %v676 = vadd.f32 %v566, %v638
      %v677 = vadd.f32 %v567, %v667
      %v678 = vadd.f32 %v568, %v641
      %v679 = vadd.f32 %v569, %v670
      %s680 = scalar_lea.vmem %s5, 8
      %v681 = vld [vmem:[%s680] sm:$0x3]
      %v683 = vperm.slane %v681, 0
      %v684 = vperm.slane %v681, 1
      %v685 = vrot.slane %v684, 4
      %v686 = vsel %vm319, %v683, %v685
      %v688 = vmul.f32 %v252, %v686
      %s689 = scalar_lea.vmem %s1, 128
      %v690 = vld [vmem:[%s689] sm:$0xff]
      %v691 = vld [vmem:[%s689 + $0x8] sm:$0xff]
      %v692 = vld [vmem:[%s689 + $0x10] sm:$0xff]
      %v693 = vld [vmem:[%s689 + $0x18] sm:$0xff]
      %695 = vst [vmem:[#allocation1] ss:$2 sm:$0xff] %v688
      %v696 = vld.sshfl [vmem:[#allocation1] sm:$0xff pattern:$0x75316420]
      %v697 = vld.sshfl [vmem:[#allocation1 + $0x8] sm:$0xff pattern:$0x75316420]
      %v699 = vsel %vm306, %v690, 0
      %v702 = vsel %vm306, %v691, 0
      %v705 = vsel %vm306, %v692, 0
      %v708 = vsel %vm306, %v693, 0
      %v710 = vsel %vm319, %v696, 0
      %v712 = vsel %vm319, %v697, 0
      %714 = vmatpush.msra.mxu0 0.0
      %715 = vmatpush.msra.mxu0 0.0
      %716 = vmatpush.msra.mxu0 0.0
      %717 = vmatpush.msra.mxu0 0.0
      %718 = vmatpush.msra.mxu0 0.0
      %719 = vmatpush.msra.mxu0 0.0
      %720 = vmatpush.msra.mxu0 0.0
      %721 = vmatpush.msra.mxu0 0.0
      %722 = vmatpush.msra.mxu0 0.0
      %723 = vmatpush.msra.mxu0 0.0
      %724 = vmatpush.msra.mxu0 0.0
      %725 = vmatpush.msra.mxu0 0.0
      %726 = vmatpush.msra.mxu0 0.0
      %727 = vmatpush.msra.mxu0 0.0
      %728 = vmatpush.msra.mxu0 0.0
      %729 = vmatpush.msra.mxu0 %v710
      %730 = vmatmul.f32.gmra.mxu0 %v699
      %v731 = vpop.f32.mrf.mxu0
      %v732 = vadd.f32 0.0, %v731
      %733 = vmatmul.f32.gmra.mxu0 %v702
      %v734 = vpop.f32.mrf.mxu0
      %v735 = vadd.f32 0.0, %v734
      %736 = vmatmul.f32.gmra.mxu0 %v705
      %v737 = vpop.f32.mrf.mxu0
      %v738 = vadd.f32 0.0, %v737
      %739 = vmatmul.f32.gmra.mxu0 %v708
      %v740 = vpop.f32.mrf.mxu0
      %v741 = vadd.f32 0.0, %v740
      %742 = vdwg.mxu0
      %743 = vmatpush.msra.mxu0 0.0
      %744 = vmatpush.msra.mxu0 0.0
      %745 = vmatpush.msra.mxu0 0.0
      %746 = vmatpush.msra.mxu0 0.0
      %747 = vmatpush.msra.mxu0 0.0
      %748 = vmatpush.msra.mxu0 0.0
      %749 = vmatpush.msra.mxu0 0.0
      %750 = vmatpush.msra.mxu0 0.0
      %751 = vmatpush.msra.mxu0 0.0
      %752 = vmatpush.msra.mxu0 0.0
      %753 = vmatpush.msra.mxu0 0.0
      %754 = vmatpush.msra.mxu0 0.0
      %755 = vmatpush.msra.mxu0 0.0
      %756 = vmatpush.msra.mxu0 0.0
      %757 = vmatpush.msra.mxu0 0.0
      %758 = vmatpush.msra.mxu0 %v712
      %759 = vmatmul.f32.gmra.mxu0 %v699
      %v760 = vpop.f32.mrf.mxu0
      %v761 = vadd.f32 0.0, %v760
      %762 = vmatmul.f32.gmra.mxu0 %v702
      %v763 = vpop.f32.mrf.mxu0
      %v764 = vadd.f32 0.0, %v763
      %765 = vmatmul.f32.gmra.mxu0 %v705
      %v766 = vpop.f32.mrf.mxu0
      %v767 = vadd.f32 0.0, %v766
      %768 = vmatmul.f32.gmra.mxu0 %v708
      %v769 = vpop.f32.mrf.mxu0
      %v770 = vadd.f32 0.0, %v769
      %771 = vdwg.mxu0
      %v772 = vadd.f32 %v672, %v732
      %v773 = vadd.f32 %v673, %v761
      %v774 = vadd.f32 %v674, %v735
      %v775 = vadd.f32 %v675, %v764
      %v776 = vadd.f32 %v676, %v738
      %v777 = vadd.f32 %v677, %v767
      %v778 = vadd.f32 %v678, %v741
      %v779 = vadd.f32 %v679, %v770
      %780 = vst [vmem:[#allocation1] ss:$2 sm:$0xff] %v252
      %v781 = vld.sshfl [vmem:[#allocation1] sm:$0xff pattern:$0x75316420]
      %v782 = vld.sshfl [vmem:[#allocation1 + $0x8] sm:$0xff pattern:$0x75316420]
      %785 = vrot.lane.b32.xlu0 %v781, 127
      %v786 = vpop.permute.xlu0 %785
      %787 = vrot.lane.b32.xlu0 %v782, 127
      %v788 = vpop.permute.xlu0 %787
      %vm789 = vcmp.lt.s32.totalorder %v264, 127
      %v790 = vsel %vm789, %v786, %v788
      %v791 = vsel %vm789, %v788, %v786
      %s792 = scalar_lea.vmem %s5, 10
      %v793 = vld [vmem:[%s792] sm:$0x3]
      %v795 = vperm.slane %v793, 0
      %v796 = vperm.slane %v793, 1
      %v799 = vmul.f32 %v790, %v795
      %v800 = vmul.f32 %v791, %v796
      %s801 = scalar_lea.vmem %s1, 160
      %v802 = vld [vmem:[%s801] sm:$0xff]
      %v803 = vld [vmem:[%s801 + $0x8] sm:$0xff]
      %v804 = vld [vmem:[%s801 + $0x10] sm:$0xff]
      %v805 = vld [vmem:[%s801 + $0x18] sm:$0xff]
      %v807 = vsel %vm306, %v802, 0
      %v810 = vsel %vm306, %v803, 0
      %v813 = vsel %vm306, %v804, 0
      %v816 = vsel %vm306, %v805, 0
      %v819 = vsel %vm319, %v799, 0
      %v822 = vsel %vm319, %v800, 0
      %824 = vmatpush.msra.mxu0 0.0
      %825 = vmatpush.msra.mxu0 0.0
      %826 = vmatpush.msra.mxu0 0.0
      %827 = vmatpush.msra.mxu0 0.0
      %828 = vmatpush.msra.mxu0 0.0
      %829 = vmatpush.msra.mxu0 0.0
      %830 = vmatpush.msra.mxu0 0.0
      %831 = vmatpush.msra.mxu0 0.0
      %832 = vmatpush.msra.mxu0 0.0
      %833 = vmatpush.msra.mxu0 0.0
      %834 = vmatpush.msra.mxu0 0.0
      %835 = vmatpush.msra.mxu0 0.0
      %836 = vmatpush.msra.mxu0 0.0
      %837 = vmatpush.msra.mxu0 0.0
      %838 = vmatpush.msra.mxu0 0.0
      %839 = vmatpush.msra.mxu0 %v819
      %840 = vmatmul.f32.gmra.mxu0 %v807
      %v841 = vpop.f32.mrf.mxu0
      %v842 = vadd.f32 0.0, %v841
      %843 = vmatmul.f32.gmra.mxu0 %v810
      %v844 = vpop.f32.mrf.mxu0
      %v845 = vadd.f32 0.0, %v844
      %846 = vmatmul.f32.gmra.mxu0 %v813
      %v847 = vpop.f32.mrf.mxu0
      %v848 = vadd.f32 0.0, %v847
      %849 = vmatmul.f32.gmra.mxu0 %v816
      %v850 = vpop.f32.mrf.mxu0
      %v851 = vadd.f32 0.0, %v850
      %852 = vdwg.mxu0
      %853 = vmatpush.msra.mxu0 0.0
      %854 = vmatpush.msra.mxu0 0.0
      %855 = vmatpush.msra.mxu0 0.0
      %856 = vmatpush.msra.mxu0 0.0
      %857 = vmatpush.msra.mxu0 0.0
      %858 = vmatpush.msra.mxu0 0.0
      %859 = vmatpush.msra.mxu0 0.0
      %860 = vmatpush.msra.mxu0 0.0
      %861 = vmatpush.msra.mxu0 0.0
      %862 = vmatpush.msra.mxu0 0.0
      %863 = vmatpush.msra.mxu0 0.0
      %864 = vmatpush.msra.mxu0 0.0
      %865 = vmatpush.msra.mxu0 0.0
      %866 = vmatpush.msra.mxu0 0.0
      %867 = vmatpush.msra.mxu0 0.0
      %868 = vmatpush.msra.mxu0 %v822
      %869 = vmatmul.f32.gmra.mxu0 %v807
      %v870 = vpop.f32.mrf.mxu0
      %v871 = vadd.f32 0.0, %v870
      %872 = vmatmul.f32.gmra.mxu0 %v810
      %v873 = vpop.f32.mrf.mxu0
      %v874 = vadd.f32 0.0, %v873
      %875 = vmatmul.f32.gmra.mxu0 %v813
      %v876 = vpop.f32.mrf.mxu0
      %v877 = vadd.f32 0.0, %v876
      %878 = vmatmul.f32.gmra.mxu0 %v816
      %v879 = vpop.f32.mrf.mxu0
      %v880 = vadd.f32 0.0, %v879
      %881 = vdwg.mxu0
      %v882 = vadd.f32 %v772, %v842
      %v883 = vadd.f32 %v773, %v871
      %v884 = vadd.f32 %v774, %v845
      %v885 = vadd.f32 %v775, %v874
      %v886 = vadd.f32 %v776, %v848
      %v887 = vadd.f32 %v777, %v877
      %v888 = vadd.f32 %v778, %v851
      %v889 = vadd.f32 %v779, %v880
      %890 = vst [vmem:[#allocation1] ss:$2 sm:$0xff] %v252
      %v891 = vld.sshfl [vmem:[#allocation1] sm:$0xff pattern:$0x75316420]
      %v892 = vld.sshfl [vmem:[#allocation1 + $0x8] sm:$0xff pattern:$0x75316420]
      %895 = vrot.lane.b32.xlu0 %v891, 113
      %v896 = vpop.permute.xlu0 %895
      %897 = vrot.lane.b32.xlu0 %v892, 113
      %v898 = vpop.permute.xlu0 %897
      %vm899 = vcmp.lt.s32.totalorder %v264, 113
      %v900 = vsel %vm899, %v896, %v898
      %v901 = vsel %vm899, %v898, %v896
      %s902 = scalar_lea.vmem %s5, 12
      %v903 = vld [vmem:[%s902] sm:$0x3]
      %v905 = vperm.slane %v903, 0
      %v906 = vperm.slane %v903, 1
      %v909 = vmul.f32 %v900, %v905
      %v910 = vmul.f32 %v901, %v906
      %s911 = scalar_lea.vmem %s1, 192
      %v912 = vld [vmem:[%s911] sm:$0xff]
      %v913 = vld [vmem:[%s911 + $0x8] sm:$0xff]
      %v914 = vld [vmem:[%s911 + $0x10] sm:$0xff]
      %v915 = vld [vmem:[%s911 + $0x18] sm:$0xff]
      %v917 = vsel %vm306, %v912, 0
      %v920 = vsel %vm306, %v913, 0
      %v923 = vsel %vm306, %v914, 0
      %v926 = vsel %vm306, %v915, 0
      %v929 = vsel %vm319, %v909, 0
      %v932 = vsel %vm319, %v910, 0
      %934 = vmatpush.msra.mxu0 0.0
      %935 = vmatpush.msra.mxu0 0.0
      %936 = vmatpush.msra.mxu0 0.0
      %937 = vmatpush.msra.mxu0 0.0
      %938 = vmatpush.msra.mxu0 0.0
      %939 = vmatpush.msra.mxu0 0.0
      %940 = vmatpush.msra.mxu0 0.0
      %941 = vmatpush.msra.mxu0 0.0
      %942 = vmatpush.msra.mxu0 0.0
      %943 = vmatpush.msra.mxu0 0.0
      %944 = vmatpush.msra.mxu0 0.0
      %945 = vmatpush.msra.mxu0 0.0
      %946 = vmatpush.msra.mxu0 0.0
      %947 = vmatpush.msra.mxu0 0.0
      %948 = vmatpush.msra.mxu0 0.0
      %949 = vmatpush.msra.mxu0 %v929
      %950 = vmatmul.f32.gmra.mxu0 %v917
      %v951 = vpop.f32.mrf.mxu0
      %v952 = vadd.f32 0.0, %v951
      %953 = vmatmul.f32.gmra.mxu0 %v920
      %v954 = vpop.f32.mrf.mxu0
      %v955 = vadd.f32 0.0, %v954
      %956 = vmatmul.f32.gmra.mxu0 %v923
      %v957 = vpop.f32.mrf.mxu0
      %v958 = vadd.f32 0.0, %v957
      %959 = vmatmul.f32.gmra.mxu0 %v926
      %v960 = vpop.f32.mrf.mxu0
      %v961 = vadd.f32 0.0, %v960
      %962 = vdwg.mxu0
      %963 = vmatpush.msra.mxu0 0.0
      %964 = vmatpush.msra.mxu0 0.0
      %965 = vmatpush.msra.mxu0 0.0
      %966 = vmatpush.msra.mxu0 0.0
      %967 = vmatpush.msra.mxu0 0.0
      %968 = vmatpush.msra.mxu0 0.0
      %969 = vmatpush.msra.mxu0 0.0
      %970 = vmatpush.msra.mxu0 0.0
      %971 = vmatpush.msra.mxu0 0.0
      %972 = vmatpush.msra.mxu0 0.0
      %973 = vmatpush.msra.mxu0 0.0
      %974 = vmatpush.msra.mxu0 0.0
      %975 = vmatpush.msra.mxu0 0.0
      %976 = vmatpush.msra.mxu0 0.0
      %977 = vmatpush.msra.mxu0 0.0
      %978 = vmatpush.msra.mxu0 %v932
      %979 = vmatmul.f32.gmra.mxu0 %v917
      %v980 = vpop.f32.mrf.mxu0
      %v981 = vadd.f32 0.0, %v980
      %982 = vmatmul.f32.gmra.mxu0 %v920
      %v983 = vpop.f32.mrf.mxu0
      %v984 = vadd.f32 0.0, %v983
      %985 = vmatmul.f32.gmra.mxu0 %v923
      %v986 = vpop.f32.mrf.mxu0
      %v987 = vadd.f32 0.0, %v986
      %988 = vmatmul.f32.gmra.mxu0 %v926
      %v989 = vpop.f32.mrf.mxu0
      %v990 = vadd.f32 0.0, %v989
      %991 = vdwg.mxu0
      %v992 = vadd.f32 %v882, %v952
      %v993 = vadd.f32 %v883, %v981
      %v994 = vadd.f32 %v884, %v955
      %v995 = vadd.f32 %v885, %v984
      %v996 = vadd.f32 %v886, %v958
      %v997 = vadd.f32 %v887, %v987
      %v998 = vadd.f32 %v888, %v961
      %v999 = vadd.f32 %v889, %v990
      %1000 = vst [vmem:[#allocation1] ss:$2 sm:$0xff] %v252
      %v1001 = vld.sshfl [vmem:[#allocation1] sm:$0xff pattern:$0x75316420]
      %v1002 = vld.sshfl [vmem:[#allocation1 + $0x8] sm:$0xff pattern:$0x75316420]
      %1005 = vrot.lane.b32.xlu0 %v1001, 112
      %v1006 = vpop.permute.xlu0 %1005
      %1007 = vrot.lane.b32.xlu0 %v1002, 112
      %v1008 = vpop.permute.xlu0 %1007
      %vm1009 = vcmp.lt.s32.totalorder %v264, 112
      %v1010 = vsel %vm1009, %v1006, %v1008
      %v1011 = vsel %vm1009, %v1008, %v1006
      %s1012 = scalar_lea.vmem %s5, 14
      %v1013 = vld [vmem:[%s1012] sm:$0x3]
      %v1015 = vperm.slane %v1013, 0
      %v1016 = vperm.slane %v1013, 1
      %v1019 = vmul.f32 %v1010, %v1015
      %v1020 = vmul.f32 %v1011, %v1016
      %s1021 = scalar_lea.vmem %s1, 224
      %v1022 = vld [vmem:[%s1021] sm:$0xff]
      %v1023 = vld [vmem:[%s1021 + $0x8] sm:$0xff]
      %v1024 = vld [vmem:[%s1021 + $0x10] sm:$0xff]
      %v1025 = vld [vmem:[%s1021 + $0x18] sm:$0xff]
      %v1027 = vsel %vm306, %v1022, 0
      %v1030 = vsel %vm306, %v1023, 0
      %v1033 = vsel %vm306, %v1024, 0
      %v1036 = vsel %vm306, %v1025, 0
      %v1039 = vsel %vm319, %v1019, 0
      %v1042 = vsel %vm319, %v1020, 0
      %1044 = vmatpush.msra.mxu0 0.0
      %1045 = vmatpush.msra.mxu0 0.0
      %1046 = vmatpush.msra.mxu0 0.0
      %1047 = vmatpush.msra.mxu0 0.0
      %1048 = vmatpush.msra.mxu0 0.0
      %1049 = vmatpush.msra.mxu0 0.0
      %1050 = vmatpush.msra.mxu0 0.0
      %1051 = vmatpush.msra.mxu0 0.0
      %1052 = vmatpush.msra.mxu0 0.0
      %1053 = vmatpush.msra.mxu0 0.0
      %1054 = vmatpush.msra.mxu0 0.0
      %1055 = vmatpush.msra.mxu0 0.0
      %1056 = vmatpush.msra.mxu0 0.0
      %1057 = vmatpush.msra.mxu0 0.0
      %1058 = vmatpush.msra.mxu0 0.0
      %1059 = vmatpush.msra.mxu0 %v1039
      %1060 = vmatmul.f32.gmra.mxu0 %v1027
      %v1061 = vpop.f32.mrf.mxu0
      %v1062 = vadd.f32 0.0, %v1061
      %1063 = vmatmul.f32.gmra.mxu0 %v1030
      %v1064 = vpop.f32.mrf.mxu0
      %v1065 = vadd.f32 0.0, %v1064
      %1066 = vmatmul.f32.gmra.mxu0 %v1033
      %v1067 = vpop.f32.mrf.mxu0
      %v1068 = vadd.f32 0.0, %v1067
      %1069 = vmatmul.f32.gmra.mxu0 %v1036
      %v1070 = vpop.f32.mrf.mxu0
      %v1071 = vadd.f32 0.0, %v1070
      %1072 = vdwg.mxu0
      %1073 = vmatpush.msra.mxu0 0.0
      %1074 = vmatpush.msra.mxu0 0.0
      %1075 = vmatpush.msra.mxu0 0.0
      %1076 = vmatpush.msra.mxu0 0.0
      %1077 = vmatpush.msra.mxu0 0.0
      %1078 = vmatpush.msra.mxu0 0.0
      %1079 = vmatpush.msra.mxu0 0.0
      %1080 = vmatpush.msra.mxu0 0.0
      %1081 = vmatpush.msra.mxu0 0.0
      %1082 = vmatpush.msra.mxu0 0.0
      %1083 = vmatpush.msra.mxu0 0.0
      %1084 = vmatpush.msra.mxu0 0.0
      %1085 = vmatpush.msra.mxu0 0.0
      %1086 = vmatpush.msra.mxu0 0.0
      %1087 = vmatpush.msra.mxu0 0.0
      %1088 = vmatpush.msra.mxu0 %v1042
      %1089 = vmatmul.f32.gmra.mxu0 %v1027
      %v1090 = vpop.f32.mrf.mxu0
      %v1091 = vadd.f32 0.0, %v1090
      %1092 = vmatmul.f32.gmra.mxu0 %v1030
      %v1093 = vpop.f32.mrf.mxu0
      %v1094 = vadd.f32 0.0, %v1093
      %1095 = vmatmul.f32.gmra.mxu0 %v1033
      %v1096 = vpop.f32.mrf.mxu0
      %v1097 = vadd.f32 0.0, %v1096
      %1098 = vmatmul.f32.gmra.mxu0 %v1036
      %v1099 = vpop.f32.mrf.mxu0
      %v1100 = vadd.f32 0.0, %v1099
      %1101 = vdwg.mxu0
      %v1102 = vadd.f32 %v992, %v1062
      %v1103 = vadd.f32 %v993, %v1091
      %v1104 = vadd.f32 %v994, %v1065
      %v1105 = vadd.f32 %v995, %v1094
      %v1106 = vadd.f32 %v996, %v1068
      %v1107 = vadd.f32 %v997, %v1097
      %v1108 = vadd.f32 %v998, %v1071
      %v1109 = vadd.f32 %v999, %v1100
      %1110 = vst [vmem:[#allocation1] ss:$2 sm:$0xff] %v252
      %v1111 = vld.sshfl [vmem:[#allocation1] sm:$0xff pattern:$0x75316420]
      %v1112 = vld.sshfl [vmem:[#allocation1 + $0x8] sm:$0xff pattern:$0x75316420]
      %1115 = vrot.lane.b32.xlu0 %v1111, 111
      %v1116 = vpop.permute.xlu0 %1115
      %1117 = vrot.lane.b32.xlu0 %v1112, 111
      %v1118 = vpop.permute.xlu0 %1117
      %vm1119 = vcmp.lt.s32.totalorder %v264, 111
      %v1120 = vsel %vm1119, %v1116, %v1118
      %v1121 = vsel %vm1119, %v1118, %v1116
      %s1122 = scalar_lea.vmem %s5, 16
      %v1123 = vld [vmem:[%s1122] sm:$0x3]
      %v1125 = vperm.slane %v1123, 0
      %v1126 = vperm.slane %v1123, 1
      %v1129 = vmul.f32 %v1120, %v1125
      %v1130 = vmul.f32 %v1121, %v1126
      %s1131 = scalar_lea.vmem %s1, 256
      %v1132 = vld [vmem:[%s1131] sm:$0xff]
      %v1133 = vld [vmem:[%s1131 + $0x8] sm:$0xff]
      %v1134 = vld [vmem:[%s1131 + $0x10] sm:$0xff]
      %v1135 = vld [vmem:[%s1131 + $0x18] sm:$0xff]
      %v1137 = vsel %vm306, %v1132, 0
      %v1140 = vsel %vm306, %v1133, 0
      %v1143 = vsel %vm306, %v1134, 0
      %v1146 = vsel %vm306, %v1135, 0
      %v1149 = vsel %vm319, %v1129, 0
      %v1152 = vsel %vm319, %v1130, 0
      %1154 = vmatpush.msra.mxu0 0.0
      %1155 = vmatpush.msra.mxu0 0.0
      %1156 = vmatpush.msra.mxu0 0.0
      %1157 = vmatpush.msra.mxu0 0.0
      %1158 = vmatpush.msra.mxu0 0.0
      %1159 = vmatpush.msra.mxu0 0.0
      %1160 = vmatpush.msra.mxu0 0.0
      %1161 = vmatpush.msra.mxu0 0.0
      %1162 = vmatpush.msra.mxu0 0.0
      %1163 = vmatpush.msra.mxu0 0.0
      %1164 = vmatpush.msra.mxu0 0.0
      %1165 = vmatpush.msra.mxu0 0.0
      %1166 = vmatpush.msra.mxu0 0.0
      %1167 = vmatpush.msra.mxu0 0.0
      %1168 = vmatpush.msra.mxu0 0.0
      %1169 = vmatpush.msra.mxu0 %v1149
      %1170 = vmatmul.f32.gmra.mxu0 %v1137
      %v1171 = vpop.f32.mrf.mxu0
      %v1172 = vadd.f32 0.0, %v1171
      %1173 = vmatmul.f32.gmra.mxu0 %v1140
      %v1174 = vpop.f32.mrf.mxu0
      %v1175 = vadd.f32 0.0, %v1174
      %1176 = vmatmul.f32.gmra.mxu0 %v1143
      %v1177 = vpop.f32.mrf.mxu0
      %v1178 = vadd.f32 0.0, %v1177
      %1179 = vmatmul.f32.gmra.mxu0 %v1146
      %v1180 = vpop.f32.mrf.mxu0
      %v1181 = vadd.f32 0.0, %v1180
      %1182 = vdwg.mxu0
      %1183 = vmatpush.msra.mxu0 0.0
      %1184 = vmatpush.msra.mxu0 0.0
      %1185 = vmatpush.msra.mxu0 0.0
      %1186 = vmatpush.msra.mxu0 0.0
      %1187 = vmatpush.msra.mxu0 0.0
      %1188 = vmatpush.msra.mxu0 0.0
      %1189 = vmatpush.msra.mxu0 0.0
      %1190 = vmatpush.msra.mxu0 0.0
      %1191 = vmatpush.msra.mxu0 0.0
      %1192 = vmatpush.msra.mxu0 0.0
      %1193 = vmatpush.msra.mxu0 0.0
      %1194 = vmatpush.msra.mxu0 0.0
      %1195 = vmatpush.msra.mxu0 0.0
      %1196 = vmatpush.msra.mxu0 0.0
      %1197 = vmatpush.msra.mxu0 0.0
      %1198 = vmatpush.msra.mxu0 %v1152
      %1199 = vmatmul.f32.gmra.mxu0 %v1137
      %v1200 = vpop.f32.mrf.mxu0
      %v1201 = vadd.f32 0.0, %v1200
      %1202 = vmatmul.f32.gmra.mxu0 %v1140
      %v1203 = vpop.f32.mrf.mxu0
      %v1204 = vadd.f32 0.0, %v1203
      %1205 = vmatmul.f32.gmra.mxu0 %v1143
      %v1206 = vpop.f32.mrf.mxu0
      %v1207 = vadd.f32 0.0, %v1206
      %1208 = vmatmul.f32.gmra.mxu0 %v1146
      %v1209 = vpop.f32.mrf.mxu0
      %v1210 = vadd.f32 0.0, %v1209
      %1211 = vdwg.mxu0
      %v1212 = vadd.f32 %v1102, %v1172
      %v1213 = vadd.f32 %v1103, %v1201
      %v1214 = vadd.f32 %v1104, %v1175
      %v1215 = vadd.f32 %v1105, %v1204
      %v1216 = vadd.f32 %v1106, %v1178
      %v1217 = vadd.f32 %v1107, %v1207
      %v1218 = vadd.f32 %v1108, %v1181
      %v1219 = vadd.f32 %v1109, %v1210
      %v1220 = vld [vmem:[%s2] sm:$0xff]
      %v1221 = vld [vmem:[%s2 + $0x8] sm:$0xff]
      %v1222 = vld [vmem:[%s2 + $0x10] sm:$0xff]
      %v1223 = vld [vmem:[%s2 + $0x18] sm:$0xff]
      %1225 = vset.pattern.permute.xlu0 0
      %1226 = vperm.xlu0 %1225, %v1220
      %v1227 = vpop.permute.xlu0 %1226
      %1230 = vset.pattern.permute.xlu0 0
      %1231 = vperm.xlu0 %1230, %v1221
      %v1232 = vpop.permute.xlu0 %1231
      %1235 = vset.pattern.permute.xlu0 0
      %1236 = vperm.xlu0 %1235, %v1222
      %v1237 = vpop.permute.xlu0 %1236
      %1240 = vset.pattern.permute.xlu0 0
      %1241 = vperm.xlu0 %1240, %v1223
      %v1242 = vpop.permute.xlu0 %1241
      %v1244 = vadd.f32 %v1212, %v1227
      %v1245 = vadd.f32 %v1213, %v1227
      %v1246 = vadd.f32 %v1214, %v1232
      %v1247 = vadd.f32 %v1215, %v1232
      %v1248 = vadd.f32 %v1216, %v1237
      %v1249 = vadd.f32 %v1217, %v1237
      %v1250 = vadd.f32 %v1218, %v1242
      %v1251 = vadd.f32 %v1219, %v1242
      %v1252 = vmax.f32 %v1244, 0.0
      %v1253 = vmax.f32 %v1245, 0.0
      %v1254 = vmax.f32 %v1246, 0.0
      %v1255 = vmax.f32 %v1247, 0.0
      %v1256 = vmax.f32 %v1248, 0.0
      %v1257 = vmax.f32 %v1249, 0.0
      %v1258 = vmax.f32 %v1250, 0.0
      %v1259 = vmax.f32 %v1251, 0.0
      %v1260 = vld [vmem:[%s3] sm:$0xff]
      %v1261 = vld [vmem:[%s3 + $0x8] sm:$0xff]
      %v1262 = vld [vmem:[%s3 + $0x10] sm:$0xff]
      %v1263 = vld [vmem:[%s3 + $0x18] sm:$0xff]
      %v1264 = vld [vmem:[%s3 + $0x20] sm:$0xff]
      %v1265 = vld [vmem:[%s3 + $0x28] sm:$0xff]
      %v1266 = vld [vmem:[%s3 + $0x30] sm:$0x3]
      %v1267 = vld [vmem:[%s4] sm:$0xff]
      %v1268 = vld [vmem:[%s4 + $0x8] sm:$0xff]
      %v1269 = vld [vmem:[%s4 + $0x10] sm:$0xff]
      %v1270 = vld [vmem:[%s4 + $0x18] sm:$0xff]
      %v1271 = vld [vmem:[%s4 + $0x20] sm:$0xff]
      %v1272 = vld [vmem:[%s4 + $0x28] sm:$0xff]
      %v1273 = vld [vmem:[%s4 + $0x30] sm:$0x3]
      %1275 = vset.pattern.permute.xlu0 0
      %1276 = vperm.xlu0 %1275, %v1267
      %v1277 = vpop.permute.xlu0 %1276
      %1280 = vset.pattern.permute.xlu0 0
      %1281 = vperm.xlu0 %1280, %v1268
      %v1282 = vpop.permute.xlu0 %1281
      %1285 = vset.pattern.permute.xlu0 0
      %1286 = vperm.xlu0 %1285, %v1269
      %v1287 = vpop.permute.xlu0 %1286
      %1290 = vset.pattern.permute.xlu0 0
      %1291 = vperm.xlu0 %1290, %v1270
      %v1292 = vpop.permute.xlu0 %1291
      %1295 = vset.pattern.permute.xlu0 0
      %1296 = vperm.xlu0 %1295, %v1271
      %v1297 = vpop.permute.xlu0 %1296
      %1300 = vset.pattern.permute.xlu0 0
      %1301 = vperm.xlu0 %1300, %v1272
      %v1302 = vpop.permute.xlu0 %1301
      %1305 = vset.pattern.permute.xlu0 0
      %1306 = vperm.xlu0 %1305, %v1273
      %v1307 = vpop.permute.xlu0 %1306
      %vm1309 = vcmask 261120
      %v1311 = vsel %vm1309, %v1260, 0
      %v1314 = vsel %vm1309, %v1261, 0
      %v1317 = vsel %vm1309, %v1262, 0
      %v1320 = vsel %vm1309, %v1263, 0
      %v1323 = vsel %vm1309, %v1264, 0
      %v1326 = vsel %vm1309, %v1265, 0
      %v1329 = vsel %vm1309, %v1266, 0
      %1331 = vmatpush.msra.mxu0 0.0
      %1332 = vmatpush.msra.mxu0 0.0
      %1333 = vmatpush.msra.mxu0 0.0
      %1334 = vmatpush.msra.mxu0 0.0
      %1335 = vmatpush.msra.mxu0 0.0
      %1336 = vmatpush.msra.mxu0 0.0
      %1337 = vmatpush.msra.mxu0 0.0
      %1338 = vmatpush.msra.mxu0 0.0
      %1339 = vmatpush.msra.mxu0 0.0
      %1340 = vmatpush.msra.mxu0 0.0
      %1341 = vmatpush.msra.mxu0 0.0
      %1342 = vmatpush.msra.mxu0 0.0
      %1343 = vmatpush.msra.mxu0 %v1258
      %1344 = vmatpush.msra.mxu0 %v1256
      %1345 = vmatpush.msra.mxu0 %v1254
      %1346 = vmatpush.msra.mxu0 %v1252
      %1347 = vmatmul.f32.gmra.mxu0 %v1311
      %v1348 = vpop.f32.mrf.mxu0
      %v1349 = vadd.f32 %v1277, %v1348
      %1350 = vmatmul.f32.gmra.mxu0 %v1314
      %v1351 = vpop.f32.mrf.mxu0
      %v1352 = vadd.f32 %v1282, %v1351
      %1353 = vmatmul.f32.gmra.mxu0 %v1317
      %v1354 = vpop.f32.mrf.mxu0
      %v1355 = vadd.f32 %v1287, %v1354
      %1356 = vmatmul.f32.gmra.mxu0 %v1320
      %v1357 = vpop.f32.mrf.mxu0
      %v1358 = vadd.f32 %v1292, %v1357
      %1359 = vmatmul.f32.gmra.mxu0 %v1323
      %v1360 = vpop.f32.mrf.mxu0
      %v1361 = vadd.f32 %v1297, %v1360
      %1362 = vmatmul.f32.gmra.mxu0 %v1326
      %v1363 = vpop.f32.mrf.mxu0
      %v1364 = vadd.f32 %v1302, %v1363
      %1365 = vmatmul.f32.gmra.mxu0 %v1329
      %v1366 = vpop.f32.mrf.mxu0
      %v1367 = vadd.f32 %v1307, %v1366
      %1368 = vdwg.mxu0
      %1369 = vmatpush.msra.mxu0 0.0
      %1370 = vmatpush.msra.mxu0 0.0
      %1371 = vmatpush.msra.mxu0 0.0
      %1372 = vmatpush.msra.mxu0 0.0
      %1373 = vmatpush.msra.mxu0 0.0
      %1374 = vmatpush.msra.mxu0 0.0
      %1375 = vmatpush.msra.mxu0 0.0
      %1376 = vmatpush.msra.mxu0 0.0
      %1377 = vmatpush.msra.mxu0 0.0
      %1378 = vmatpush.msra.mxu0 0.0
      %1379 = vmatpush.msra.mxu0 0.0
      %1380 = vmatpush.msra.mxu0 0.0
      %1381 = vmatpush.msra.mxu0 %v1259
      %1382 = vmatpush.msra.mxu0 %v1257
      %1383 = vmatpush.msra.mxu0 %v1255
      %1384 = vmatpush.msra.mxu0 %v1253
      %1385 = vmatmul.f32.gmra.mxu0 %v1311
      %v1386 = vpop.f32.mrf.mxu0
      %v1387 = vadd.f32 %v1277, %v1386
      %1388 = vmatmul.f32.gmra.mxu0 %v1314
      %v1389 = vpop.f32.mrf.mxu0
      %v1390 = vadd.f32 %v1282, %v1389
      %1391 = vmatmul.f32.gmra.mxu0 %v1317
      %v1392 = vpop.f32.mrf.mxu0
      %v1393 = vadd.f32 %v1287, %v1392
      %1394 = vmatmul.f32.gmra.mxu0 %v1320
      %v1395 = vpop.f32.mrf.mxu0
      %v1396 = vadd.f32 %v1292, %v1395
      %1397 = vmatmul.f32.gmra.mxu0 %v1323
      %v1398 = vpop.f32.mrf.mxu0
      %v1399 = vadd.f32 %v1297, %v1398
      %1400 = vmatmul.f32.gmra.mxu0 %v1326
      %v1401 = vpop.f32.mrf.mxu0
      %v1402 = vadd.f32 %v1302, %v1401
      %1403 = vmatmul.f32.gmra.mxu0 %v1329
      %v1404 = vpop.f32.mrf.mxu0
      %v1405 = vadd.f32 %v1307, %v1404
      %1406 = vdwg.mxu0
      %1407 = vst [vmem:[%s251] sm:$0xff] %v1349
      %1408 = vst [vmem:[%s251 + $0x8] sm:$0xff] %v1387
      %1409 = vst [vmem:[%s251 + $0x10] sm:$0xff] %v1352
      %1410 = vst [vmem:[%s251 + $0x18] sm:$0xff] %v1390
      %1411 = vst [vmem:[%s251 + $0x20] sm:$0xff] %v1355
      %1412 = vst [vmem:[%s251 + $0x28] sm:$0xff] %v1393
      %1413 = vst [vmem:[%s251 + $0x30] sm:$0xff] %v1358
      %1414 = vst [vmem:[%s251 + $0x38] sm:$0xff] %v1396
      %1415 = vst [vmem:[%s251 + $0x40] sm:$0xff] %v1361
      %1416 = vst [vmem:[%s251 + $0x48] sm:$0xff] %v1399
      %1417 = vst [vmem:[%s251 + $0x50] sm:$0xff] %v1364
      %1418 = vst [vmem:[%s251 + $0x58] sm:$0xff] %v1402
      %1419 = vst [vmem:[%s251 + $0x60] sm:$0x3] %v1367
      %1420 = vst [vmem:[%s251 + $0x68] sm:$0x3] %v1405
      %p1421 = scmp.lt.s32.totalorder %s17, 1
      %s1422 = scalar_select %p1421, %s17, 1
      %s1423 = smul.addr %s1422, 14
      %s1424 = smul.addr %s1423, 8
      %s1425 = scalar_lea.vmem %s6, %s1424
      // Predicated region
      $region45: #{tpu_custom_call.1} parent=43 // pred_check
        %p1426 = pneg %p166
      $region46: #{tpu_custom_call.1} parent=43 // pred_check_branch
        %1428 = sbr.rel (%p1426) target = $region48
      $region47: #{tpu_custom_call.1} parent=43 // pred_region
        _
      $region48: #{tpu_custom_call.1} parent=43 // pred_fallthru
        _
    $region44: #{tpu_custom_call.1} parent=5 // pred_fallthru
      _
    %p1429 = scmp.le.s32.totalorder 2, %s12
    // Predicated region
    $region49: #{tpu_custom_call.1} parent=5 // pred_check
      %p1430 = pneg %p1429
    $region50: #{tpu_custom_call.1} parent=5 // pred_check_branch
      %1432 = sbr.rel (%p1430) target = $region52
    $region51: #{tpu_custom_call.1} parent=5 // pred_region
      %s1433 = ssub.s32 %s12, 2
      // Predicated region
      $region53: #{tpu_custom_call.1} parent=51 // pred_check
        %p1434 = pneg %p172
      $region54: #{tpu_custom_call.1} parent=51 // pred_check_branch
        %1436 = sbr.rel (%p1434) target = $region56
      $region55: #{tpu_custom_call.1} parent=51 // pred_region
        %p1437 = scmp.lt.s32.totalorder %s18, 1
        %s1438 = scalar_select %p1437, %s18, 1
        %s1439 = smul.addr %s1438, 14
        %s1440 = smul.addr %s1439, 8
        %s1441 = scalar_lea.vmem %s6, %s1440
      $region56: #{tpu_custom_call.1} parent=51 // pred_fallthru
        _
    $region52: #{tpu_custom_call.1} parent=5 // pred_fallthru
      _
  $region6: #{tpu_custom_call.1} parent=0 // loop_footer
    %s16 = sadd.s32 1, %s12
  $region7: #{tpu_custom_call.1} parent=0 // loop_footer_branch
    %11 = sbr.rel target = $region3
  $region8: #{tpu_custom_call.1} parent=0 // loop_exit
    _

</llo_original>
